<compile_context>
chip_gen: v6e
topology: v6e:2x2x1
jax: 0.10.0
libtpu: 0.0.40
codegen_flags: <defaults>
</compile_context>

<pallas_src>
import functools

import jax
import jax.numpy as jnp
from jax import lax
from jax.experimental import pallas as pl
from jax.experimental.pallas import tpu as pltpu


def _round_up(x, m):
    return ((x + m - 1) // m) * m


def _vmem_limit_bytes():
    """Generation-aware scoped-VMEM limit (~3/4 of physical, >= 32 MiB)."""
    try:
        cap = pltpu.get_tpu_info().vmem_capacity_bytes
    except Exception:
        cap = 64 * 1024 * 1024
    return max(32 * 1024 * 1024, min(int(cap) * 3 // 4, 96 * 1024 * 1024))


def _lstm_block_kernel(x_ref, wx_ref, wh_ref, b_ref, out_ref, h_sc, c_sc, *,
                       hidden, time_block, bb, matmul_dtype, unroll):
    """Processes `time_block` LSTM steps per grid iteration.

    x_ref  : (time_block, BB, D)   raw inputs (row r of the whole sequence is
             LSTM step r-1; global row 0 is the dummy slot for the h0/C0 row).
    wx_ref : (D, Gp)               packed input weights  [Wf_x | Wc_x | Wo_x].
    wh_ref : (Hsz, Gp)             packed recurrent wts  [Wf_h | Wc_h | Wo_h].
    b_ref  : (1, Gp)               packed gate biases.
    out_ref: (time_block, BB, 4*Hsz)  fused [h | c | f | o] rows (lane-dense).
    h_sc/c_sc: (BB, Hsz) f32 recurrent carry across grid steps.
    """
    t = pl.program_id(1)   # time-block index ("arbitrary" axis)

    # Loop-invariant operands: load / cast / broadcast ONCE per grid step.
    wx = wx_ref[...].astype(matmul_dtype)                      # (D, Gp)
    wh = wh_ref[...].astype(matmul_dtype)                      # (Hsz, Gp)
    bias = jnp.broadcast_to(b_ref[...], (bb, b_ref.shape[-1]))  # hoisted

    def step(j, carry):
        h, c = carry
        # x-side projection fused into the kernel: no f32 xg HBM round trip.
        xg = jnp.dot(x_ref[j].astype(matmul_dtype), wx,
                     preferred_element_type=jnp.float32)
        gates = (jnp.dot(h.astype(matmul_dtype), wh,
                         preferred_element_type=jnp.float32) + xg + bias)

        # Two full-width EUP passes over the whole (BB, Gp) vreg; the 32-lane
        # gate sub-ranges are sliced afterwards (cheaper than 3 sliced passes).
        sig = jax.nn.sigmoid(gates)
        tnh = jnp.tanh(gates)
        f = sig[:, 0:hidden]
        o = sig[:, 2 * hidden:3 * hidden]
        c_tilde = tnh[:, hidden:2 * hidden]

        # Reference bug preserved: the "i" gate reuses linear_f, so i == f.
        c_new = f * c + f * c_tilde
        h_new = o * jnp.tanh(c_new)

        # One lane-dense (BB, 4*hidden) store per step.
        out_ref[j] = jnp.concatenate([h_new, c_new, f, o], axis=-1)
        return (h_new, c_new)

    def run(lo, carry0):
        u = max(1, min(unroll, time_block - lo))     # partial unroll
        h, c = lax.fori_loop(lo, time_block, step, carry0, unroll=u)
        h_sc[...] = h
        c_sc[...] = c

    # First time block: global row 0 is the (h0, C0) = 0 output row.  It is
    # written once here and the recurrence starts at j = 1 with a zero carry,
    # so the hot loop contains no per-step select / broadcast.
    @pl.when(t == 0)
    def _first_block():
        z = jnp.zeros((bb, hidden), jnp.float32)
        out_ref[0] = jnp.zeros((bb, 4 * hidden), jnp.float32)
        run(1, (z, z))

    @pl.when(t != 0)
    def _later_blocks():
        run(0, (h_sc[...], c_sc[...]))


def lstm_forward(x, params, *, time_block=32, batch_block=None,
                 matmul_dtype=jnp.float32, lane_multiple=128, unroll=4):
    """x: (L, B, D) float32. Returns (H, C, F, I, O) matching the PyTorch module.

    matmul_dtype=bf16 + lane_multiple=256 are worth it on v6e at production
    hidden sizes; keep f32 / 128 for small hidden and on v5e.
    """
    L, B, D = x.shape
    Hsz = params["wf_h"].shape[0]
    G = 3 * Hsz
    Gp = _round_up(G, lane_multiple)     # fused gate dim, padded to full lanes
    C_out = 4 * Hsz                      # fused output channels: [h | c | f | o]

    BB = B if batch_block is None else batch_block
    assert B % BB == 0, "batch_block must divide batch"
    # Guard the (8, 128) BlockSpec rule on the second-to-last dims.
    assert BB == B or BB % 8 == 0, \
        "batch_block must equal B or be a multiple of 8 (f32 sublane tiling)"
    nb = B // BB                         # parallel batch tiles (v7x: 2 TCs)

    # ---- pack weights once, outside the hot path --------------------------
    # Fused gate order: f, c~, o.  (linear_i exists but is unused: ref bug i==f.)
    wx_all = jnp.concatenate(
        [params["wf_x"].T, params["wc_x"].T, params["wo_x"].T], axis=1)   # (D, 3H)
    wh_all = jnp.concatenate(
        [params["wf_h"].T, params["wc_h"].T, params["wo_h"].T], axis=1)   # (H, 3H)
    bias_all = jnp.concatenate([params["bf"], params["bc"], params["bo"]])  # (3H,)
    wx_all = jnp.pad(wx_all, ((0, 0), (0, Gp - G)))
    wh_all = jnp.pad(wh_all, ((0, 0), (0, Gp - G)))
    bias_all = jnp.pad(bias_all, (0, Gp - G)).reshape(1, Gp)

    # Row 0 is the dummy slot for the (h0, C0) output row; trailing rows pad
    # L+1 up to a multiple of time_block.  Pad steps update the scratch carry
    # with dummy inputs (outputs are sliced off, results stay correct) — do
    # not reuse the final carry for streaming decode without masking them.
    Lp = _round_up(L + 1, time_block)
    xp = jnp.zeros((Lp, B, D), x.dtype).at[1:L + 1].set(x)

    grid = (nb, Lp // time_block)

    fused = pl.pallas_call(
        functools.partial(_lstm_block_kernel, hidden=Hsz, time_block=time_block,
                          bb=BB, matmul_dtype=matmul_dtype, unroll=unroll),
        out_shape=jax.ShapeDtypeStruct((Lp, B, C_out), jnp.float32),
        grid_spec=pltpu.PrefetchScalarGridSpec(
            num_scalar_prefetch=0,
            grid=grid,
            in_specs=[
                # Raw x tile (x projection happens inside the kernel).
                pl.BlockSpec((time_block, BB, D), lambda bi, ti: (ti, bi, 0)),
                # Packed weights / bias: constant blocks across the grid.
                pl.BlockSpec((D, Gp), lambda bi, ti: (0, 0)),
                pl.BlockSpec((Hsz, Gp), lambda bi, ti: (0, 0)),
                pl.BlockSpec((1, Gp), lambda bi, ti: (0, 0)),
            ],
            out_specs=pl.BlockSpec((time_block, BB, C_out),
                                   lambda bi, ti: (ti, bi, 0)),
            scratch_shapes=[
                pltpu.VMEM((BB, Hsz), jnp.float32),   # h carry
                pltpu.VMEM((BB, Hsz), jnp.float32),   # C carry
            ],
        ),
        compiler_params=pltpu.CompilerParams(
            # batch tiles independent (megacore), time blocks sequential.
            dimension_semantics=("parallel", "arbitrary"),
            vmem_limit_bytes=_vmem_limit_bytes(),
        ),
    )(xp, wx_all, wh_all, bias_all)

    # Static slices only.  For Hsz >= 128, emitting H/C/F/O as separate
    # lane-dense pallas outputs avoids these strided unpacks.
    H = fused[:L + 1, :, 0:Hsz]
    C = fused[:L + 1, :, Hsz:2 * Hsz]
    F = fused[1:L + 1, :, 2 * Hsz:3 * Hsz]
    O = fused[1:L + 1, :, 3 * Hsz:4 * Hsz]
    I = F                                 # i gate reuses linear_f -> I == F
    return H, C, F, I, O


def decode(h, params):
    # linear_decode is not on the forward hot path; plain JAX glue.
    return h @ params["wd"].T + params["bd"]


def init_params(key, input_size, hidden_size, output_size):
    """Deterministic init mirroring nn.Linear defaults: U(-1/sqrt(fan_in), ...)."""
    ks = jax.random.split(key, 10)
    fan_in = input_size + hidden_size
    bnd = 1.0 / jnp.sqrt(fan_in)

    def lin(kw, kb):
        w = jax.random.uniform(kw, (hidden_size, fan_in), jnp.float32, -bnd, bnd)
        b = jax.random.uniform(kb, (hidden_size,), jnp.float32, -bnd, bnd)
        # cat order is (h, x): first `hidden_size` columns act on h, rest on x.
        return w[:, :hidden_size], w[:, hidden_size:], b

    wf_h, wf_x, bf = lin(ks[0], ks[1])
    wi_h, wi_x, bi = lin(ks[2], ks[3])   # linear_i exists but is unused (ref bug)
    wc_h, wc_x, bc = lin(ks[4], ks[5])
    wo_h, wo_x, bo = lin(ks[6], ks[7])
    bd_bnd = 1.0 / jnp.sqrt(hidden_size)
    wd = jax.random.uniform(ks[8], (output_size, hidden_size), jnp.float32,
                            -bd_bnd, bd_bnd)
    bd = jax.random.uniform(ks[9], (output_size,), jnp.float32, -bd_bnd, bd_bnd)
    return dict(wf_h=wf_h, wf_x=wf_x, bf=bf,
                wi_h=wi_h, wi_x=wi_x, bi=bi,
                wc_h=wc_h, wc_x=wc_x, bc=bc,
                wo_h=wo_h, wo_x=wo_x, bo=bo,
                wd=wd, bd=bd)


def _reference_forward(x, params):
    """Plain-JAX reference (mirrors the PyTorch loop) for a correctness check."""
    L, B, D = x.shape
    Hsz = params["wf_h"].shape[0]
    hp = jax.lax.Precision.HIGHEST

    def step(carry, xt):
        h, c = carry

        def gate(wh, wx, b):
            return (jnp.dot(h, wh.T, precision=hp)
                    + jnp.dot(xt, wx.T, precision=hp) + b)

        f = jax.nn.sigmoid(gate(params["wf_h"], params["wf_x"], params["bf"]))
        i = jax.nn.sigmoid(gate(params["wf_h"], params["wf_x"], params["bf"]))
        c_new = f * c + i * jnp.tanh(gate(params["wc_h"], params["wc_x"], params["bc"]))
        o = jax.nn.sigmoid(gate(params["wo_h"], params["wo_x"], params["bo"]))
        h_new = o * jnp.tanh(c_new)
        return (h_new, c_new), (h_new, c_new, f, i, o)

    h0 = jnp.zeros((B, Hsz), jnp.float32)
    c0 = jnp.zeros((B, Hsz), jnp.float32)
    _, (Hs, Cs, Fs, Is, Os) = jax.lax.scan(step, (h0, c0), x)
    H = jnp.concatenate([h0[None], Hs], axis=0)
    C = jnp.concatenate([c0[None], Cs], axis=0)
    return H, C, Fs, Is, Os


if __name__ == "__main__":
    seq_len, batch, input_size, hidden_size, output_size = 8, 2, 16, 32, 10

    key = jax.random.PRNGKey(0)
    kx, kp = jax.random.split(key)
    x = jax.random.normal(kx, (seq_len, batch, input_size), jnp.float32)
    params = init_params(kp, input_size, hidden_size, output_size)

    # time_block=3 -> Lp = 9 = L+1 exactly (3 time blocks, exercises both the
    # t==0 and t>0 kernel branches, no padded steps).
    H, C, F, I, O = jax.block_until_ready(
        lstm_forward(x, params, time_block=3))

    H_ref, C_ref, F_ref, I_ref, O_ref = _reference_forward(x, params)
    # Tolerance 1e-4: in-kernel f32 matmuls use Mosaic's default f32 path
    # while the XLA reference uses Precision.HIGHEST.
    for a, b in zip((H, C, F, I, O), (H_ref, C_ref, F_ref, I_ref, O_ref)):
        assert a.shape == b.shape, (a.shape, b.shape)
        assert jnp.allclose(a, b, atol=1e-4, rtol=1e-4)

    # decode() exists on the module but is not part of forward(); exercised once.
    _ = jax.block_until_ready(decode(H[-1], params))

    print("KERNEL_OK")
</pallas_src>

<mosaic_0001>
module attributes {stable_mosaic.version = 11 : i64} {
  func.func @_lstm_block_kernel(%arg0: i32, %arg1: i32, %arg2: memref<3x2x16xf32, #tpu.memory_space<vmem>>, %arg3: memref<16x128xf32, #tpu.memory_space<vmem>>, %arg4: memref<32x128xf32, #tpu.memory_space<vmem>>, %arg5: memref<1x128xf32, #tpu.memory_space<vmem>>, %arg6: memref<3x2x128xf32, #tpu.memory_space<vmem>>, %arg7: memref<2x32xf32, #tpu.memory_space<vmem>>, %arg8: memref<2x32xf32, #tpu.memory_space<vmem>>) attributes {dimension_semantics = [#tpu.dimension_semantics<parallel>, #tpu.dimension_semantics<arbitrary>], iteration_bounds = array<i64: 1, 3>, scalar_prefetch = 0 : i64, scratch_operands = 2 : i64, tpu.core_type = #tpu.core_type<tc>, window_params = [{transform_indices = @transform_0, window_bounds = array<i64: 3, 2, 16>}, {pipeline_mode = #tpu.pipeline_mode<synchronous>, transform_indices = @transform_1, window_bounds = array<i64: 16, 128>}, {pipeline_mode = #tpu.pipeline_mode<synchronous>, transform_indices = @transform_2, window_bounds = array<i64: 32, 128>}, {pipeline_mode = #tpu.pipeline_mode<synchronous>, transform_indices = @transform_3, window_bounds = array<i64: 1, 128>}, {transform_indices = @transform_4, window_bounds = array<i64: 3, 2, 128>}]} {
    %c0 = arith.constant 0 : index
    %c0_0 = arith.constant 0 : index
    %0 = vector.load %arg3[%c0, %c0_0] : memref<16x128xf32, #tpu.memory_space<vmem>>, vector<16x128xf32>
    %c0_1 = arith.constant 0 : index
    %c0_2 = arith.constant 0 : index
    %1 = vector.load %arg4[%c0_1, %c0_2] : memref<32x128xf32, #tpu.memory_space<vmem>>, vector<32x128xf32>
    %c0_3 = arith.constant 0 : index
    %c0_4 = arith.constant 0 : index
    %2 = vector.load %arg5[%c0_3, %c0_4] : memref<1x128xf32, #tpu.memory_space<vmem>>, vector<1x128xf32>
    %3 = vector.shape_cast %2 : vector<1x128xf32> to vector<1x128xf32>
    %4 = vector.broadcast %3 : vector<1x128xf32> to vector<2x128xf32>
    %c0_i32 = arith.constant 0 : i32
    %5 = arith.cmpi eq, %arg1, %c0_i32 : i32
    %6 = arith.extui %5 : i1 to i32
    %c0_i32_5 = arith.constant 0 : i32
    %7 = arith.cmpi ne, %6, %c0_i32_5 : i32
    scf.if %7 {
      %cst = arith.constant 0.000000e+00 : f32
      %11 = vector.broadcast %cst : f32 to vector<2x32xf32>
      %cst_8 = arith.constant 0.000000e+00 : f32
      %12 = vector.broadcast %cst_8 : f32 to vector<2x128xf32>
      %c0_9 = arith.constant 0 : index
      %c0_10 = arith.constant 0 : index
      %c0_11 = arith.constant 0 : index
      %13 = vector.load %arg6[%c0_9, %c0_10, %c0_11] : memref<3x2x128xf32, #tpu.memory_space<vmem>>, vector<1x2x128xf32>
      %14 = vector.shape_cast %13 : vector<1x2x128xf32> to vector<2x128xf32>
      %15 = vector.shape_cast %12 : vector<2x128xf32> to vector<1x2x128xf32>
      tpu.vector_store %arg6[%c0_9, %c0_10, %c0_11], %15 {strides = array<i32>} : memref<3x2x128xf32, #tpu.memory_space<vmem>>, vector<1x2x128xf32>,
      %c1_i32 = arith.constant 1 : i32
      %16 = arith.index_cast %c1_i32 : i32 to index
      %c0_12 = arith.constant 0 : index
      %c0_13 = arith.constant 0 : index
      %17 = vector.load %arg2[%16, %c0_12, %c0_13] : memref<3x2x16xf32, #tpu.memory_space<vmem>>, vector<1x2x16xf32>
      %18 = vector.shape_cast %17 : vector<1x2x16xf32> to vector<2x16xf32>
      %cst_14 = arith.constant dense<0.000000e+00> : vector<2x128xf32>
      %19 = tpu.matmul %18, %0, %cst_14 {dimension_numbers = #tpu.dot_dimension_numbers<[1], [0], [0], [1], [0, 0, 1, 1], [], []>} : vector<2x16xf32>, vector<16x128xf32>, vector<2x128xf32> -> vector<2x128xf32>
      %cst_15 = arith.constant dense<0.000000e+00> : vector<2x128xf32>
      %20 = tpu.matmul %11, %1, %cst_15 {dimension_numbers = #tpu.dot_dimension_numbers<[1], [0], [0], [1], [0, 0, 1, 1], [], []>} : vector<2x32xf32>, vector<32x128xf32>, vector<2x128xf32> -> vector<2x128xf32>
      %21 = arith.addf %20, %19 : vector<2x128xf32>
      %22 = arith.addf %21, %4 : vector<2x128xf32>
      %23 = arith.negf %22 : vector<2x128xf32>
      %24 = math.exp %23 : vector<2x128xf32>
      %cst_16 = arith.constant 1.000000e+00 : f32
      %25 = vector.broadcast %cst_16 : f32 to vector<2x128xf32>
      %26 = arith.addf %25, %24 : vector<2x128xf32>
      %27 = arith.divf %25, %26 : vector<2x128xf32>
      %28 = math.tanh %22 : vector<2x128xf32>
      %29 = vector.extract_strided_slice %27 {offsets = [0, 0], sizes = [2, 32], strides = [1, 1]} : vector<2x128xf32> to vector<2x32xf32>
      %30 = vector.extract_strided_slice %27 {offsets = [0, 64], sizes = [2, 32], strides = [1, 1]} : vector<2x128xf32> to vector<2x32xf32>
      %31 = vector.extract_strided_slice %28 {offsets = [0, 32], sizes = [2, 32], strides = [1, 1]} : vector<2x128xf32> to vector<2x32xf32>
      %32 = arith.mulf %29, %11 : vector<2x32xf32>
      %33 = arith.mulf %29, %31 : vector<2x32xf32>
      %34 = arith.addf %32, %33 : vector<2x32xf32>
      %35 = math.tanh %34 : vector<2x32xf32>
      %36 = arith.mulf %30, %35 : vector<2x32xf32>
      %37 = tpu.concatenate %36, %34, %29, %30 in 1 : vector<2x32xf32>, vector<2x32xf32>, vector<2x32xf32>, vector<2x32xf32> -> vector<2x128xf32>
      %38 = arith.index_cast %c1_i32 : i32 to index
      %c0_17 = arith.constant 0 : index
      %c0_18 = arith.constant 0 : index
      %39 = vector.load %arg6[%38, %c0_17, %c0_18] : memref<3x2x128xf32, #tpu.memory_space<vmem>>, vector<1x2x128xf32>
      %40 = vector.shape_cast %39 : vector<1x2x128xf32> to vector<2x128xf32>
      %41 = vector.shape_cast %37 : vector<2x128xf32> to vector<1x2x128xf32>
      tpu.vector_store %arg6[%38, %c0_17, %c0_18], %41 {strides = array<i32>} : memref<3x2x128xf32, #tpu.memory_space<vmem>>, vector<1x2x128xf32>,
      %c2_i32 = arith.constant 2 : i32
      %42 = arith.index_cast %c2_i32 : i32 to index
      %c0_19 = arith.constant 0 : index
      %c0_20 = arith.constant 0 : index
      %43 = vector.load %arg2[%42, %c0_19, %c0_20] : memref<3x2x16xf32, #tpu.memory_space<vmem>>, vector<1x2x16xf32>
      %44 = vector.shape_cast %43 : vector<1x2x16xf32> to vector<2x16xf32>
      %cst_21 = arith.constant dense<0.000000e+00> : vector<2x128xf32>
      %45 = tpu.matmul %44, %0, %cst_21 {dimension_numbers = #tpu.dot_dimension_numbers<[1], [0], [0], [1], [0, 0, 1, 1], [], []>} : vector<2x16xf32>, vector<16x128xf32>, vector<2x128xf32> -> vector<2x128xf32>
      %cst_22 = arith.constant dense<0.000000e+00> : vector<2x128xf32>
      %46 = tpu.matmul %36, %1, %cst_22 {dimension_numbers = #tpu.dot_dimension_numbers<[1], [0], [0], [1], [0, 0, 1, 1], [], []>} : vector<2x32xf32>, vector<32x128xf32>, vector<2x128xf32> -> vector<2x128xf32>
      %47 = arith.addf %46, %45 : vector<2x128xf32>
      %48 = arith.addf %47, %4 : vector<2x128xf32>
      %49 = arith.negf %48 : vector<2x128xf32>
      %50 = math.exp %49 : vector<2x128xf32>
      %cst_23 = arith.constant 1.000000e+00 : f32
      %51 = vector.broadcast %cst_23 : f32 to vector<2x128xf32>
      %52 = arith.addf %51, %50 : vector<2x128xf32>
      %53 = arith.divf %51, %52 : vector<2x128xf32>
      %54 = math.tanh %48 : vector<2x128xf32>
      %55 = vector.extract_strided_slice %53 {offsets = [0, 0], sizes = [2, 32], strides = [1, 1]} : vector<2x128xf32> to vector<2x32xf32>
      %56 = vector.extract_strided_slice %53 {offsets = [0, 64], sizes = [2, 32], strides = [1, 1]} : vector<2x128xf32> to vector<2x32xf32>
      %57 = vector.extract_strided_slice %54 {offsets = [0, 32], sizes = [2, 32], strides = [1, 1]} : vector<2x128xf32> to vector<2x32xf32>
      %58 = arith.mulf %55, %34 : vector<2x32xf32>
      %59 = arith.mulf %55, %57 : vector<2x32xf32>
      %60 = arith.addf %58, %59 : vector<2x32xf32>
      %61 = math.tanh %60 : vector<2x32xf32>
      %62 = arith.mulf %56, %61 : vector<2x32xf32>
      %63 = tpu.concatenate %62, %60, %55, %56 in 1 : vector<2x32xf32>, vector<2x32xf32>, vector<2x32xf32>, vector<2x32xf32> -> vector<2x128xf32>
      %64 = arith.index_cast %c2_i32 : i32 to index
      %c0_24 = arith.constant 0 : index
      %c0_25 = arith.constant 0 : index
      %65 = vector.load %arg6[%64, %c0_24, %c0_25] : memref<3x2x128xf32, #tpu.memory_space<vmem>>, vector<1x2x128xf32>
      %66 = vector.shape_cast %65 : vector<1x2x128xf32> to vector<2x128xf32>
      %67 = vector.shape_cast %63 : vector<2x128xf32> to vector<1x2x128xf32>
      tpu.vector_store %arg6[%64, %c0_24, %c0_25], %67 {strides = array<i32>} : memref<3x2x128xf32, #tpu.memory_space<vmem>>, vector<1x2x128xf32>,
      %c2_i32_26 = arith.constant 2 : i32
      %c0_27 = arith.constant 0 : index
      %c0_28 = arith.constant 0 : index
      %68 = vector.load %arg7[%c0_27, %c0_28] : memref<2x32xf32, #tpu.memory_space<vmem>>, vector<2x32xf32>
      tpu.vector_store %arg7[%c0_27, %c0_28], %62 {strides = array<i32>} : memref<2x32xf32, #tpu.memory_space<vmem>>, vector<2x32xf32>,
      %c0_29 = arith.constant 0 : index
      %c0_30 = arith.constant 0 : index
      %69 = vector.load %arg8[%c0_29, %c0_30] : memref<2x32xf32, #tpu.memory_space<vmem>>, vector<2x32xf32>
      tpu.vector_store %arg8[%c0_29, %c0_30], %60 {strides = array<i32>} : memref<2x32xf32, #tpu.memory_space<vmem>>, vector<2x32xf32>,
    } else {
    }
    %c0_i32_6 = arith.constant 0 : i32
    %8 = arith.cmpi ne, %arg1, %c0_i32_6 : i32
    %9 = arith.extui %8 : i1 to i32
    %c0_i32_7 = arith.constant 0 : i32
    %10 = arith.cmpi ne, %9, %c0_i32_7 : i32
    scf.if %10 {
      %c0_8 = arith.constant 0 : index
      %c0_9 = arith.constant 0 : index
      %11 = vector.load %arg7[%c0_8, %c0_9] : memref<2x32xf32, #tpu.memory_space<vmem>>, vector<2x32xf32>
      %c0_10 = arith.constant 0 : index
      %c0_11 = arith.constant 0 : index
      %12 = vector.load %arg8[%c0_10, %c0_11] : memref<2x32xf32, #tpu.memory_space<vmem>>, vector<2x32xf32>
      %c0_i32_12 = arith.constant 0 : i32
      %13 = arith.index_cast %c0_i32_12 : i32 to index
      %c0_13 = arith.constant 0 : index
      %c0_14 = arith.constant 0 : index
      %14 = vector.load %arg2[%13, %c0_13, %c0_14] : memref<3x2x16xf32, #tpu.memory_space<vmem>>, vector<1x2x16xf32>
      %15 = vector.shape_cast %14 : vector<1x2x16xf32> to vector<2x16xf32>
      %cst = arith.constant dense<0.000000e+00> : vector<2x128xf32>
      %16 = tpu.matmul %15, %0, %cst {dimension_numbers = #tpu.dot_dimension_numbers<[1], [0], [0], [1], [0, 0, 1, 1], [], []>} : vector<2x16xf32>, vector<16x128xf32>, vector<2x128xf32> -> vector<2x128xf32>
      %cst_15 = arith.constant dense<0.000000e+00> : vector<2x128xf32>
      %17 = tpu.matmul %11, %1, %cst_15 {dimension_numbers = #tpu.dot_dimension_numbers<[1], [0], [0], [1], [0, 0, 1, 1], [], []>} : vector<2x32xf32>, vector<32x128xf32>, vector<2x128xf32> -> vector<2x128xf32>
      %18 = arith.addf %17, %16 : vector<2x128xf32>
      %19 = arith.addf %18, %4 : vector<2x128xf32>
      %20 = arith.negf %19 : vector<2x128xf32>
      %21 = math.exp %20 : vector<2x128xf32>
      %cst_16 = arith.constant 1.000000e+00 : f32
      %22 = vector.broadcast %cst_16 : f32 to vector<2x128xf32>
      %23 = arith.addf %22, %21 : vector<2x128xf32>
      %24 = arith.divf %22, %23 : vector<2x128xf32>
      %25 = math.tanh %19 : vector<2x128xf32>
      %26 = vector.extract_strided_slice %24 {offsets = [0, 0], sizes = [2, 32], strides = [1, 1]} : vector<2x128xf32> to vector<2x32xf32>
      %27 = vector.extract_strided_slice %24 {offsets = [0, 64], sizes = [2, 32], strides = [1, 1]} : vector<2x128xf32> to vector<2x32xf32>
      %28 = vector.extract_strided_slice %25 {offsets = [0, 32], sizes = [2, 32], strides = [1, 1]} : vector<2x128xf32> to vector<2x32xf32>
      %29 = arith.mulf %26, %12 : vector<2x32xf32>
      %30 = arith.mulf %26, %28 : vector<2x32xf32>
      %31 = arith.addf %29, %30 : vector<2x32xf32>
      %32 = math.tanh %31 : vector<2x32xf32>
      %33 = arith.mulf %27, %32 : vector<2x32xf32>
      %34 = tpu.concatenate %33, %31, %26, %27 in 1 : vector<2x32xf32>, vector<2x32xf32>, vector<2x32xf32>, vector<2x32xf32> -> vector<2x128xf32>
      %35 = arith.index_cast %c0_i32_12 : i32 to index
      %c0_17 = arith.constant 0 : index
      %c0_18 = arith.constant 0 : index
      %36 = vector.load %arg6[%35, %c0_17, %c0_18] : memref<3x2x128xf32, #tpu.memory_space<vmem>>, vector<1x2x128xf32>
      %37 = vector.shape_cast %36 : vector<1x2x128xf32> to vector<2x128xf32>
      %38 = vector.shape_cast %34 : vector<2x128xf32> to vector<1x2x128xf32>
      tpu.vector_store %arg6[%35, %c0_17, %c0_18], %38 {strides = array<i32>} : memref<3x2x128xf32, #tpu.memory_space<vmem>>, vector<1x2x128xf32>,
      %c1_i32 = arith.constant 1 : i32
      %39 = arith.index_cast %c1_i32 : i32 to index
      %c0_19 = arith.constant 0 : index
      %c0_20 = arith.constant 0 : index
      %40 = vector.load %arg2[%39, %c0_19, %c0_20] : memref<3x2x16xf32, #tpu.memory_space<vmem>>, vector<1x2x16xf32>
      %41 = vector.shape_cast %40 : vector<1x2x16xf32> to vector<2x16xf32>
      %cst_21 = arith.constant dense<0.000000e+00> : vector<2x128xf32>
      %42 = tpu.matmul %41, %0, %cst_21 {dimension_numbers = #tpu.dot_dimension_numbers<[1], [0], [0], [1], [0, 0, 1, 1], [], []>} : vector<2x16xf32>, vector<16x128xf32>, vector<2x128xf32> -> vector<2x128xf32>
      %cst_22 = arith.constant dense<0.000000e+00> : vector<2x128xf32>
      %43 = tpu.matmul %33, %1, %cst_22 {dimension_numbers = #tpu.dot_dimension_numbers<[1], [0], [0], [1], [0, 0, 1, 1], [], []>} : vector<2x32xf32>, vector<32x128xf32>, vector<2x128xf32> -> vector<2x128xf32>
      %44 = arith.addf %43, %42 : vector<2x128xf32>
      %45 = arith.addf %44, %4 : vector<2x128xf32>
      %46 = arith.negf %45 : vector<2x128xf32>
      %47 = math.exp %46 : vector<2x128xf32>
      %cst_23 = arith.constant 1.000000e+00 : f32
      %48 = vector.broadcast %cst_23 : f32 to vector<2x128xf32>
      %49 = arith.addf %48, %47 : vector<2x128xf32>
      %50 = arith.divf %48, %49 : vector<2x128xf32>
      %51 = math.tanh %45 : vector<2x128xf32>
      %52 = vector.extract_strided_slice %50 {offsets = [0, 0], sizes = [2, 32], strides = [1, 1]} : vector<2x128xf32> to vector<2x32xf32>
      %53 = vector.extract_strided_slice %50 {offsets = [0, 64], sizes = [2, 32], strides = [1, 1]} : vector<2x128xf32> to vector<2x32xf32>
      %54 = vector.extract_strided_slice %51 {offsets = [0, 32], sizes = [2, 32], strides = [1, 1]} : vector<2x128xf32> to vector<2x32xf32>
      %55 = arith.mulf %52, %31 : vector<2x32xf32>
      %56 = arith.mulf %52, %54 : vector<2x32xf32>
      %57 = arith.addf %55, %56 : vector<2x32xf32>
      %58 = math.tanh %57 : vector<2x32xf32>
      %59 = arith.mulf %53, %58 : vector<2x32xf32>
      %60 = tpu.concatenate %59, %57, %52, %53 in 1 : vector<2x32xf32>, vector<2x32xf32>, vector<2x32xf32>, vector<2x32xf32> -> vector<2x128xf32>
      %61 = arith.index_cast %c1_i32 : i32 to index
      %c0_24 = arith.constant 0 : index
      %c0_25 = arith.constant 0 : index
      %62 = vector.load %arg6[%61, %c0_24, %c0_25] : memref<3x2x128xf32, #tpu.memory_space<vmem>>, vector<1x2x128xf32>
      %63 = vector.shape_cast %62 : vector<1x2x128xf32> to vector<2x128xf32>
      %64 = vector.shape_cast %60 : vector<2x128xf32> to vector<1x2x128xf32>
      tpu.vector_store %arg6[%61, %c0_24, %c0_25], %64 {strides = array<i32>} : memref<3x2x128xf32, #tpu.memory_space<vmem>>, vector<1x2x128xf32>,
      %c2_i32 = arith.constant 2 : i32
      %65 = arith.index_cast %c2_i32 : i32 to index
      %c0_26 = arith.constant 0 : index
      %c0_27 = arith.constant 0 : index
      %66 = vector.load %arg2[%65, %c0_26, %c0_27] : memref<3x2x16xf32, #tpu.memory_space<vmem>>, vector<1x2x16xf32>
      %67 = vector.shape_cast %66 : vector<1x2x16xf32> to vector<2x16xf32>
      %cst_28 = arith.constant dense<0.000000e+00> : vector<2x128xf32>
      %68 = tpu.matmul %67, %0, %cst_28 {dimension_numbers = #tpu.dot_dimension_numbers<[1], [0], [0], [1], [0, 0, 1, 1], [], []>} : vector<2x16xf32>, vector<16x128xf32>, vector<2x128xf32> -> vector<2x128xf32>
      %cst_29 = arith.constant dense<0.000000e+00> : vector<2x128xf32>
      %69 = tpu.matmul %59, %1, %cst_29 {dimension_numbers = #tpu.dot_dimension_numbers<[1], [0], [0], [1], [0, 0, 1, 1], [], []>} : vector<2x32xf32>, vector<32x128xf32>, vector<2x128xf32> -> vector<2x128xf32>
      %70 = arith.addf %69, %68 : vector<2x128xf32>
      %71 = arith.addf %70, %4 : vector<2x128xf32>
      %72 = arith.negf %71 : vector<2x128xf32>
      %73 = math.exp %72 : vector<2x128xf32>
      %cst_30 = arith.constant 1.000000e+00 : f32
      %74 = vector.broadcast %cst_30 : f32 to vector<2x128xf32>
      %75 = arith.addf %74, %73 : vector<2x128xf32>
      %76 = arith.divf %74, %75 : vector<2x128xf32>
      %77 = math.tanh %71 : vector<2x128xf32>
      %78 = vector.extract_strided_slice %76 {offsets = [0, 0], sizes = [2, 32], strides = [1, 1]} : vector<2x128xf32> to vector<2x32xf32>
      %79 = vector.extract_strided_slice %76 {offsets = [0, 64], sizes = [2, 32], strides = [1, 1]} : vector<2x128xf32> to vector<2x32xf32>
      %80 = vector.extract_strided_slice %77 {offsets = [0, 32], sizes = [2, 32], strides = [1, 1]} : vector<2x128xf32> to vector<2x32xf32>
      %81 = arith.mulf %78, %57 : vector<2x32xf32>
      %82 = arith.mulf %78, %80 : vector<2x32xf32>
      %83 = arith.addf %81, %82 : vector<2x32xf32>
      %84 = math.tanh %83 : vector<2x32xf32>
      %85 = arith.mulf %79, %84 : vector<2x32xf32>
      %86 = tpu.concatenate %85, %83, %78, %79 in 1 : vector<2x32xf32>, vector<2x32xf32>, vector<2x32xf32>, vector<2x32xf32> -> vector<2x128xf32>
      %87 = arith.index_cast %c2_i32 : i32 to index
      %c0_31 = arith.constant 0 : index
      %c0_32 = arith.constant 0 : index
      %88 = vector.load %arg6[%87, %c0_31, %c0_32] : memref<3x2x128xf32, #tpu.memory_space<vmem>>, vector<1x2x128xf32>
      %89 = vector.shape_cast %88 : vector<1x2x128xf32> to vector<2x128xf32>
      %90 = vector.shape_cast %86 : vector<2x128xf32> to vector<1x2x128xf32>
      tpu.vector_store %arg6[%87, %c0_31, %c0_32], %90 {strides = array<i32>} : memref<3x2x128xf32, #tpu.memory_space<vmem>>, vector<1x2x128xf32>,
      %c3_i32 = arith.constant 3 : i32
      %c0_33 = arith.constant 0 : index
      %c0_34 = arith.constant 0 : index
      %91 = vector.load %arg7[%c0_33, %c0_34] : memref<2x32xf32, #tpu.memory_space<vmem>>, vector<2x32xf32>
      tpu.vector_store %arg7[%c0_33, %c0_34], %85 {strides = array<i32>} : memref<2x32xf32, #tpu.memory_space<vmem>>, vector<2x32xf32>,
      %c0_35 = arith.constant 0 : index
      %c0_36 = arith.constant 0 : index
      %92 = vector.load %arg8[%c0_35, %c0_36] : memref<2x32xf32, #tpu.memory_space<vmem>>, vector<2x32xf32>
      tpu.vector_store %arg8[%c0_35, %c0_36], %83 {strides = array<i32>} : memref<2x32xf32, #tpu.memory_space<vmem>>, vector<2x32xf32>,
    } else {
    }
    return
  }
  func.func @transform_0(%arg0: i32, %arg1: i32) -> (i32, i32, i32) {
    %c0_i32 = arith.constant 0 : i32
    %c0_i32_0 = arith.constant 0 : i32
    return %arg1, %arg0, %c0_i32 : i32, i32, i32
  }
  func.func @transform_1(%arg0: i32, %arg1: i32) -> (i32, i32) {
    %c0_i32 = arith.constant 0 : i32
    %c0_i32_0 = arith.constant 0 : i32
    %c0_i32_1 = arith.constant 0 : i32
    return %c0_i32, %c0_i32_0 : i32, i32
  }
  func.func @transform_2(%arg0: i32, %arg1: i32) -> (i32, i32) {
    %c0_i32 = arith.constant 0 : i32
    %c0_i32_0 = arith.constant 0 : i32
    %c0_i32_1 = arith.constant 0 : i32
    return %c0_i32, %c0_i32_0 : i32, i32
  }
  func.func @transform_3(%arg0: i32, %arg1: i32) -> (i32, i32) {
    %c0_i32 = arith.constant 0 : i32
    %c0_i32_0 = arith.constant 0 : i32
    %c0_i32_1 = arith.constant 0 : i32
    return %c0_i32, %c0_i32_0 : i32, i32
  }
  func.func @transform_4(%arg0: i32, %arg1: i32) -> (i32, i32, i32) {
    %c0_i32 = arith.constant 0 : i32
    %c0_i32_0 = arith.constant 0 : i32
    return %arg1, %arg0, %c0_i32 : i32, i32, i32
  }
}

</mosaic_0001>

<llo_original>
// kernel: tpu_custom_call.1
$region0: #{tpu_custom_call.1}
  #allocation0 [shape = 'u32[]', space=smem, size = 0x4, offset = 0x4, fixed_abs, tag = 'smem constant byte address 0x4 - core index']
  #allocation1 [shape = 'u32[144,128]{1,0:T(1,128)}', space=vmem, size = 0x12000, scoped, tag = 'internal scratch']
  #allocation2 [shape = 'f32[2,32]{1,0:T(2,128)}', space=vmem, size = 0x400, scoped, tag = 'scratch operand']
  #allocation3 [shape = 'f32[2,32]{1,0:T(2,128)}', space=vmem, size = 0x400, scoped, tag = 'scratch operand']
  %s0 = inlined_call_operand.hbm [shape: f32[9,2,16], index: 0, kind: input, shape index: {}]
  %s1 = inlined_call_operand.hbm [shape: f32[16,128], index: 1, kind: input, shape index: {}]
  %s2 = inlined_call_operand.hbm [shape: f32[32,128], index: 2, kind: input, shape index: {}]
  %s3 = inlined_call_operand.vmem [shape: f32[1,128], index: 3, kind: input, shape index: {}]
  %s4 = inlined_call_operand.hbm [shape: f32[9,2,128], index: 4, kind: output, shape index: {}]
  %s5 = sld [smem:[#allocation0]]
  $region69: #{tpu_custom_call.1} parent=0
    _
  %s7 = ssub.s32 1, %s5
  %s8 = scalar_select 0, %s7, %s5
  $region1: #{tpu_custom_call.1} parent=0
    #allocation4 [shape = 'u8[6144]{0}', space=vmem, size = 0x1800, scoped, tag = 'input window, operand 0']
    #allocation5 [shape = 's32[2]{0}', space=sflag, size = 0x8, scoped, tag = 'scoped memory for tpu_custom_call.1']
    #allocation6 [shape = 's32[2]{0}', space=sflag, size = 0x8, scoped, tag = 'scoped memory for tpu_custom_call.1']
    #allocation7 [shape = 'u8[8192]{0}', space=vmem, size = 0x2000, scoped, tag = 'input window, operand 1, single buffered']
    #allocation8 [shape = 's32[1]{0}', space=sflag, size = 0x4, scoped, tag = 'scoped memory for tpu_custom_call.1']
    #allocation9 [shape = 'u8[16384]{0}', space=vmem, size = 0x4000, scoped, tag = 'input window, operand 2, single buffered']
    #allocation10 [shape = 'u8[6144]{0}', space=vmem, size = 0x1800, scoped, tag = 'output window, operand 0']
    %9 = vsyncpa [#allocation5], 0
    %s10 = scalar_lea.sflag [#allocation5], 1
    %11 = vsyncpa %s10, 0
    %12 = vsyncpa [#allocation8], 0
    %13 = vsyncpa [#allocation6], 0
    %s14 = scalar_lea.sflag [#allocation6], 1
    %15 = vsyncpa %s14, 0
    loop: start=0, step=1, limit=5
    $region2: #{tpu_custom_call.1} parent=1 // loop_pre_header
      _
    $region3: #{tpu_custom_call.1} parent=1 // loop_header
      %s17 = sphi 0, %s21
      %p18 = scmp.ge.s32.totalorder %s17, 5
      %s24 = sphi 0, %s36
      %s25 = sphi 0, %s32
      %s26 = sphi 0, %s24
      %s27 = sphi 0, %s25
      %s28 = sphi 0, %s26
      %s29 = sphi 0, %s27
      %s41 = sphi 0, %s43
      %s44 = sphi 0, %s41
      %s45 = sphi 0, %s44
      %s61 = sphi 0, %s45
      %s65 = sphi 0, %s65
      %s67 = sphi 0, %s65
      %s68 = sphi 0, %s67
      %s82 = sphi 0, %s68
      %s86 = sphi 0, %s86
      %s88 = sphi 0, %s86
      %s89 = sphi 0, %s88
      %s103 = sphi 0, %s89
      %s107 = sphi 0, %s107
      %s109 = sphi 0, %s107
      %s110 = sphi 0, %s109
      %s124 = sphi 0, %s110
      %s132 = sphi 0, %s134
      %s135 = sphi 0, %s132
      %s136 = sphi 0, %s135
      %s152 = sphi 0, %s136
    $region4: #{tpu_custom_call.1} parent=1 // loop_header_branch
      %20 = sbr.rel (%p18) target = $region8
    $region5: #{tpu_custom_call.1} parent=1 // loop_body
      %s22 = ssub.s32 %s17, 1
      %s23 = ssub.s32 %s17, 2
      %s30 = sadd.s32 1, %s25
      %p31 = scmp.ge.s32.totalorder %s30, 3
      %s32 = scalar_select %p31, 0, %s30
      %s33 = sadd.s32 1, %s24
      %s34 = scalar_select %p31, %s33, %s24
      %p35 = scmp.ge.s32.totalorder %s34, 1
      %s36 = scalar_select %p35, 0, %s34
      %s37 = ssub.s32 %s25, %s32
      %s38 = ssub.s32 %s24, %s36
      %s39 = sor.u32 %s37, %s38
      %p40 = scmp.eq.s32.totalorder %s39, 0
      %s42 = sadd.s32 %s41, 1
      %s43 = scalar_select %p40, %s41, %s42
      %p46 = pneg %p40
      %p47 = scmp.eq.s32.totalorder %s17, 2
      %p48 = por %p46, %p47
      %p49 = scmp.ne.s32.totalorder %s41, %s44
      %p50 = scmp.eq.s32.totalorder %s17, 0
      %p51 = por %p49, %p50
      %p52 = scmp.ne.s32.totalorder %s41, %s44
      %p53 = scmp.eq.s32.totalorder %s22, 2
      %p54 = por %p52, %p53
      %p55 = scmp.ne.s32.totalorder %s44, %s45
      %p56 = scmp.eq.s32.totalorder %s22, 0
      %p57 = por %p55, %p56
      %p58 = scmp.ne.s32.totalorder %s44, %s45
      %p59 = scmp.eq.s32.totalorder %s23, 2
      %p60 = por %p58, %p59
      %p62 = scmp.ne.s32.totalorder %s45, %s61
      %p63 = scmp.eq.s32.totalorder %s23, 0
      %p64 = por %p62, %p63
      %s66 = sadd.s32 %s65, 1
      %p69 = scmp.eq.s32.totalorder %s17, 2
      %p70 = scmp.ne.s32.totalorder %s65, %s67
      %p71 = scmp.eq.s32.totalorder %s17, 0
      %p72 = por %p70, %p71
      %p73 = scmp.ne.s32.totalorder %s65, %s67
      %p74 = scmp.eq.s32.totalorder %s22, 2
      %p75 = por %p73, %p74
      %p76 = scmp.ne.s32.totalorder %s67, %s68
      %p77 = scmp.eq.s32.totalorder %s22, 0
      %p78 = por %p76, %p77
      %p79 = scmp.ne.s32.totalorder %s67, %s68
      %p80 = scmp.eq.s32.totalorder %s23, 2
      %p81 = por %p79, %p80
      %p83 = scmp.ne.s32.totalorder %s68, %s82
      %p84 = scmp.eq.s32.totalorder %s23, 0
      %p85 = por %p83, %p84
      %s87 = sadd.s32 %s86, 1
      %p90 = scmp.eq.s32.totalorder %s17, 2
      %p91 = scmp.ne.s32.totalorder %s86, %s88
      %p92 = scmp.eq.s32.totalorder %s17, 0
      %p93 = por %p91, %p92
      %p94 = scmp.ne.s32.totalorder %s86, %s88
      %p95 = scmp.eq.s32.totalorder %s22, 2
      %p96 = por %p94, %p95
      %p97 = scmp.ne.s32.totalorder %s88, %s89
      %p98 = scmp.eq.s32.totalorder %s22, 0
      %p99 = por %p97, %p98
      %p100 = scmp.ne.s32.totalorder %s88, %s89
      %p101 = scmp.eq.s32.totalorder %s23, 2
      %p102 = por %p100, %p101
      %p104 = scmp.ne.s32.totalorder %s89, %s103
      %p105 = scmp.eq.s32.totalorder %s23, 0
      %p106 = por %p104, %p105
      %s108 = sadd.s32 %s107, 1
      %p111 = scmp.eq.s32.totalorder %s17, 2
      %p112 = scmp.ne.s32.totalorder %s107, %s109
      %p113 = scmp.eq.s32.totalorder %s17, 0
      %p114 = por %p112, %p113
      %p115 = scmp.ne.s32.totalorder %s107, %s109
      %p116 = scmp.eq.s32.totalorder %s22, 2
      %p117 = por %p115, %p116
      %p118 = scmp.ne.s32.totalorder %s109, %s110
      %p119 = scmp.eq.s32.totalorder %s22, 0
      %p120 = por %p118, %p119
      %p121 = scmp.ne.s32.totalorder %s109, %s110
      %p122 = scmp.eq.s32.totalorder %s23, 2
      %p123 = por %p121, %p122
      %p125 = scmp.ne.s32.totalorder %s110, %s124
      %p126 = scmp.eq.s32.totalorder %s23, 0
      %p127 = por %p125, %p126
      %s128 = ssub.s32 %s25, %s32
      %s129 = ssub.s32 %s24, %s36
      %s130 = sor.u32 %s128, %s129
      %p131 = scmp.eq.s32.totalorder %s130, 0
      %s133 = sadd.s32 %s132, 1
      %s134 = scalar_select %p131, %s132, %s133
      %p137 = pneg %p131
      %p138 = scmp.eq.s32.totalorder %s17, 2
      %p139 = por %p137, %p138
      %p140 = scmp.ne.s32.totalorder %s132, %s135
      %p141 = scmp.eq.s32.totalorder %s17, 0
      %p142 = por %p140, %p141
      %p143 = scmp.ne.s32.totalorder %s132, %s135
      %p144 = scmp.eq.s32.totalorder %s22, 2
      %p145 = por %p143, %p144
      %p146 = scmp.ne.s32.totalorder %s135, %s136
      %p147 = scmp.eq.s32.totalorder %s22, 0
      %p148 = por %p146, %p147
      %p149 = scmp.ne.s32.totalorder %s135, %s136
      %p150 = scmp.eq.s32.totalorder %s23, 2
      %p151 = por %p149, %p150
      %p153 = scmp.ne.s32.totalorder %s136, %s152
      %p154 = scmp.eq.s32.totalorder %s23, 0
      %p155 = por %p153, %p154
      %p156 = scmp.le.s32.totalorder 1, %s17
      %p157 = scmp.lt.s32.totalorder %s17, 4
      %p158 = pnand %p156, %p157
      %p159 = pneg %p158
      // Predicated region
      $region9: #{tpu_custom_call.1} parent=5 // pred_check
        _
      $region10: #{tpu_custom_call.1} parent=5 // pred_check_branch
        %161 = sbr.rel (%p158) target = $region12
      $region11: #{tpu_custom_call.1} parent=5 // pred_region
        %s162 = ssub.s32 %s17, 1
        // Predicated region
        $region13: #{tpu_custom_call.1} parent=11 // pred_check
          %p163 = pneg %p78
        $region14: #{tpu_custom_call.1} parent=11 // pred_check_branch
          %165 = sbr.rel (%p163) target = $region16
        $region15: #{tpu_custom_call.1} parent=11 // pred_region
          %s167 = ssub.s32 256, 256
          %168 = vsyncadd [#allocation8], %s167
          %s169 = sshll.u32 [#allocation7], 4
          %s170 = int_to_ptr.vmem [resolvable:$true] %s169
          %175 = dma.hbm_to_vmem [thread:$0]  %s1, 256, %s170, [#allocation8], 128, 128, 8
        $region16: #{tpu_custom_call.1} parent=11 // pred_fallthru
          _
        // Predicated region
        $region17: #{tpu_custom_call.1} parent=11 // pred_check
          %p176 = pneg %p99
        $region18: #{tpu_custom_call.1} parent=11 // pred_check_branch
          %178 = sbr.rel (%p176) target = $region20
        $region19: #{tpu_custom_call.1} parent=11 // pred_region
          %s180 = ssub.s32 512, 512
          %181 = vsyncadd [#allocation8], %s180
          %s182 = sshll.u32 [#allocation9], 4
          %s183 = int_to_ptr.vmem [resolvable:$true] %s182
          %188 = dma.hbm_to_vmem [thread:$0]  %s2, 512, %s183, [#allocation8], 128, 128, 8
        $region20: #{tpu_custom_call.1} parent=11 // pred_fallthru
          _
        // Predicated region
        $region21: #{tpu_custom_call.1} parent=11 // pred_check
          %p189 = pneg %p120
        $region22: #{tpu_custom_call.1} parent=11 // pred_check_branch
          %191 = sbr.rel (%p189) target = $region24
        $region23: #{tpu_custom_call.1} parent=11 // pred_region
          _
        $region24: #{tpu_custom_call.1} parent=11 // pred_fallthru
          _
      $region12: #{tpu_custom_call.1} parent=5 // pred_fallthru
        _
      %p192 = scmp.lt.s32.totalorder %s17, 3
      // Predicated region
      $region25: #{tpu_custom_call.1} parent=5 // pred_check
        %p193 = pneg %p192
      $region26: #{tpu_custom_call.1} parent=5 // pred_check_branch
        %195 = sbr.rel (%p193) target = $region28
      $region27: #{tpu_custom_call.1} parent=5 // pred_region
        // Predicated region
        $region29: #{tpu_custom_call.1} parent=27 // pred_check
          %p196 = pneg %p51
        $region30: #{tpu_custom_call.1} parent=27 // pred_check_branch
          %198 = sbr.rel (%p196) target = $region32
        $region31: #{tpu_custom_call.1} parent=27 // pred_region
          %s199 = sand.u32 %s41, 1
          %s200 = scalar_lea.sflag [#allocation5], %s199
          %s201 = sand.u32 %s41, 1
          %s202 = smul.addr %s201, 6
          %s203 = scalar_lea.vmem [#allocation4], %s202
          %s204 = smul.u32 3, %s25
          %s206 = ssub.s32 96, 96
          %207 = vsyncadd %s200, %s206
          %s208 = sadd.s32 %s24, %s204
          %s209 = smul.addr %s208, 32
          %s210 = scalar_lea.hbm %s0, %s209
          %s211 = sshll.u32 %s203, 4
          %s212 = int_to_ptr.vmem [resolvable:$true] %s211
          %217 = dma.hbm_to_vmem [thread:$0]  %s210, 96, %s212, %s200, 32, 32, 2
        $region32: #{tpu_custom_call.1} parent=27 // pred_fallthru
          _
      $region28: #{tpu_custom_call.1} parent=5 // pred_fallthru
        _
      %p218 = scmp.le.s32.totalorder 1, %s17
      %p219 = scmp.lt.s32.totalorder %s17, 4
      %p220 = pnand %p218, %p219
      %p221 = pneg %p220
      // Predicated region
      $region33: #{tpu_custom_call.1} parent=5 // pred_check
        _
      $region34: #{tpu_custom_call.1} parent=5 // pred_check_branch
        %223 = sbr.rel (%p220) target = $region36
      $region35: #{tpu_custom_call.1} parent=5 // pred_region
        %s224 = ssub.s32 %s17, 1
        %s225 = sand.u32 %s44, 1
        %s226 = scalar_lea.sflag [#allocation5], %s225
        %s227 = sand.u32 %s44, 1
        %s228 = smul.addr %s227, 6
        %s229 = scalar_lea.vmem [#allocation4], %s228
        // Predicated region
        $region37: #{tpu_custom_call.1} parent=35 // pred_check
          %p230 = pneg %p57
        $region38: #{tpu_custom_call.1} parent=35 // pred_check_branch
          %232 = sbr.rel (%p230) target = $region40
        $region39: #{tpu_custom_call.1} parent=35 // pred_region
          %233 = dma.done %s226, 96
        $region40: #{tpu_custom_call.1} parent=35 // pred_fallthru
          _
        // Predicated region
        $region41: #{tpu_custom_call.1} parent=35 // pred_check
          %p234 = pneg %p78
        $region42: #{tpu_custom_call.1} parent=35 // pred_check_branch
          %236 = sbr.rel (%p234) target = $region44
        $region43: #{tpu_custom_call.1} parent=35 // pred_region
          %237 = dma.done [#allocation8], 256
        $region44: #{tpu_custom_call.1} parent=35 // pred_fallthru
          _
        // Predicated region
        $region45: #{tpu_custom_call.1} parent=35 // pred_check
          %p238 = pneg %p99
        $region46: #{tpu_custom_call.1} parent=35 // pred_check_branch
          %240 = sbr.rel (%p238) target = $region48
        $region47: #{tpu_custom_call.1} parent=35 // pred_region
          %241 = dma.done [#allocation8], 512
        $region48: #{tpu_custom_call.1} parent=35 // pred_fallthru
          _
        %s242 = sand.u32 %s44, 1
        %s243 = scalar_lea.sflag [#allocation5], %s242
        %s244 = sand.u32 %s44, 1
        %s245 = smul.addr %s244, 6
        %s246 = scalar_lea.vmem [#allocation4], %s245
        %p247 = pneg %p57
        %p248 = pneg %p54
        %p249 = pneg %p78
        %p250 = pneg %p75
        %p251 = pneg %p99
        %p252 = pneg %p96
        %p253 = pneg %p120
        %p254 = pneg %p117
        %p255 = pneg %p148
        %p256 = pneg %p145
        %s257 = sand.u32 %s135, 1
        %s258 = scalar_lea.sflag [#allocation6], %s257
        %s259 = sand.u32 %s135, 1
        %s260 = smul.addr %s259, 6
        %s261 = scalar_lea.vmem [#allocation10], %s260
        %s262 = smul.u32 3, %s27
        %s263 = smul.u32 3, %s27
        %v264 = vld [vmem:[#allocation7] sm:$0xff]
        %v265 = vld [vmem:[#allocation7 + $0x8] sm:$0xff]
        %v266 = vld [vmem:[#allocation9] sm:$0xff]
        %v267 = vld [vmem:[#allocation9 + $0x8] sm:$0xff]
        %v268 = vld [vmem:[#allocation9 + $0x10] sm:$0xff]
        %v269 = vld [vmem:[#allocation9 + $0x18] sm:$0xff]
        %v270 = vld [vmem:[%s3] sm:$0x1]
        %v272 = vlaneseq
        %v273 = vshrl.u32 %v272, 7
        %v274 = vsub.s32 0, %v273
        %v275 = vrot.slane %v270, %v274
        %p277 = scmp.eq.s32.totalorder %s27, 0
        // Predicated region
        $region49: #{tpu_custom_call.1} parent=35 // pred_check
          %p278 = pneg %p277
        $region50: #{tpu_custom_call.1} parent=35 // pred_check_branch
          %280 = sbr.rel (%p278) target = $region52
        $region51: #{tpu_custom_call.1} parent=35 // pred_region
          %281 = vst [vmem:[%s261] sm:$0x3] 0.0
          %s282 = scalar_lea.vmem %s229, 2 [#allocation4]
          %v283 = vld [vmem:[%s282] sm:$0x3]
          %vm284 = vcmask 130048
          %v286 = vsel %vm284, %v283, 0
          %288 = vmatprep.subr.mxu0 0.0
          %289 = vmatpush1.msra.mxu0 0.0
          %290 = vmatprep.subr.mxu0 0.0
          %291 = vmatpush1.msra.mxu0 0.0
          %292 = vmatprep.subr.mxu0 0.0
          %293 = vmatpush1.msra.mxu0 0.0
          %294 = vmatprep.subr.mxu0 0.0
          %295 = vmatpush1.msra.mxu0 0.0
          %296 = vmatprep.subr.mxu0 0.0
          %297 = vmatpush1.msra.mxu0 0.0
          %298 = vmatprep.subr.mxu0 0.0
          %299 = vmatpush1.msra.mxu0 0.0
          %300 = vmatprep.subr.mxu0 0.0
          %301 = vmatpush1.msra.mxu0 0.0
          %302 = vmatprep.subr.mxu0 0.0
          %303 = vmatpush1.msra.mxu0 0.0
          %304 = vmatprep.subr.mxu0 0.0
          %305 = vmatpush1.msra.mxu0 0.0
          %306 = vmatprep.subr.mxu0 0.0
          %307 = vmatpush1.msra.mxu0 0.0
          %308 = vmatprep.subr.mxu0 0.0
          %309 = vmatpush1.msra.mxu0 0.0
          %310 = vmatprep.subr.mxu0 0.0
          %311 = vmatpush1.msra.mxu0 0.0
          %312 = vmatprep.subr.mxu0 0.0
          %313 = vmatpush1.msra.mxu0 0.0
          %314 = vmatprep.subr.mxu0 0.0
          %315 = vmatpush1.msra.mxu0 0.0
          %316 = vmatprep.subr.mxu0 0.0
          %317 = vmatpush1.msra.mxu0 %v265
          %318 = vmatprep.subr.mxu0 0.0
          %319 = vmatpush1.msra.mxu0 %v264
          %320 = vmatprep.subr.mxu0 0.0
          %321 = vmatpush2.msra.mxu0 0.0
          %322 = vmatprep.subr.mxu0 0.0
          %323 = vmatpush2.msra.mxu0 0.0
          %324 = vmatprep.subr.mxu0 0.0
          %325 = vmatpush2.msra.mxu0 0.0
          %326 = vmatprep.subr.mxu0 0.0
          %327 = vmatpush2.msra.mxu0 0.0
          %328 = vmatprep.subr.mxu0 0.0
          %329 = vmatpush2.msra.mxu0 0.0
          %330 = vmatprep.subr.mxu0 0.0
          %331 = vmatpush2.msra.mxu0 0.0
          %332 = vmatprep.subr.mxu0 0.0
          %333 = vmatpush2.msra.mxu0 0.0
          %334 = vmatprep.subr.mxu0 0.0
          %335 = vmatpush2.msra.mxu0 0.0
          %336 = vmatprep.subr.mxu0 0.0
          %337 = vmatpush2.msra.mxu0 0.0
          %338 = vmatprep.subr.mxu0 0.0
          %339 = vmatpush2.msra.mxu0 0.0
          %340 = vmatprep.subr.mxu0 0.0
          %341 = vmatpush2.msra.mxu0 0.0
          %342 = vmatprep.subr.mxu0 0.0
          %343 = vmatpush2.msra.mxu0 0.0
          %344 = vmatprep.subr.mxu0 0.0
          %345 = vmatpush2.msra.mxu0 0.0
          %346 = vmatprep.subr.mxu0 0.0
          %347 = vmatpush2.msra.mxu0 0.0
          %348 = vmatprep.subr.mxu0 0.0
          %349 = vmatpush2.msra.mxu0 0.0
          %350 = vmatprep.subr.mxu0 0.0
          %351 = vmatpush2.msra.mxu0 0.0
          %352 = vmatprep.mubr.f32.mxu0 0.0
          %353 = vmatmul.mubr.f32.gmra.mxu0 %v286
          %v354 = vpop.f32.mrf.mxu0
          %v355 = vadd.f32 0.0, %v354
          %v356 = vpop.f32.mrf.mxu0
          %357 = vdwg.mxu0
          %vm358 = vcmask 261120
          %v360 = vsel %vm358, 0.0, 0
          %362 = vmatprep.subr.mxu0 0.0
          %363 = vmatpush1.msra.mxu0 0.0
          %364 = vmatprep.subr.mxu0 0.0
          %365 = vmatpush1.msra.mxu0 0.0
          %366 = vmatprep.subr.mxu0 0.0
          %367 = vmatpush1.msra.mxu0 0.0
          %368 = vmatprep.subr.mxu0 0.0
          %369 = vmatpush1.msra.mxu0 0.0
          %370 = vmatprep.subr.mxu0 0.0
          %371 = vmatpush1.msra.mxu0 0.0
          %372 = vmatprep.subr.mxu0 0.0
          %373 = vmatpush1.msra.mxu0 0.0
          %374 = vmatprep.subr.mxu0 0.0
          %375 = vmatpush1.msra.mxu0 0.0
          %376 = vmatprep.subr.mxu0 0.0
          %377 = vmatpush1.msra.mxu0 0.0
          %378 = vmatprep.subr.mxu0 0.0
          %379 = vmatpush1.msra.mxu0 0.0
          %380 = vmatprep.subr.mxu0 0.0
          %381 = vmatpush1.msra.mxu0 0.0
          %382 = vmatprep.subr.mxu0 0.0
          %383 = vmatpush1.msra.mxu0 0.0
          %384 = vmatprep.subr.mxu0 0.0
          %385 = vmatpush1.msra.mxu0 0.0
          %386 = vmatprep.subr.mxu0 0.0
          %387 = vmatpush1.msra.mxu0 %v269
          %388 = vmatprep.subr.mxu0 0.0
          %389 = vmatpush1.msra.mxu0 %v268
          %390 = vmatprep.subr.mxu0 0.0
          %391 = vmatpush1.msra.mxu0 %v267
          %392 = vmatprep.subr.mxu0 0.0
          %393 = vmatpush1.msra.mxu0 %v266
          %394 = vmatprep.subr.mxu0 0.0
          %395 = vmatpush2.msra.mxu0 0.0
          %396 = vmatprep.subr.mxu0 0.0
          %397 = vmatpush2.msra.mxu0 0.0
          %398 = vmatprep.subr.mxu0 0.0
          %399 = vmatpush2.msra.mxu0 0.0
          %400 = vmatprep.subr.mxu0 0.0
          %401 = vmatpush2.msra.mxu0 0.0
          %402 = vmatprep.subr.mxu0 0.0
          %403 = vmatpush2.msra.mxu0 0.0
          %404 = vmatprep.subr.mxu0 0.0
          %405 = vmatpush2.msra.mxu0 0.0
          %406 = vmatprep.subr.mxu0 0.0
          %407 = vmatpush2.msra.mxu0 0.0
          %408 = vmatprep.subr.mxu0 0.0
          %409 = vmatpush2.msra.mxu0 0.0
          %410 = vmatprep.subr.mxu0 0.0
          %411 = vmatpush2.msra.mxu0 0.0
          %412 = vmatprep.subr.mxu0 0.0
          %413 = vmatpush2.msra.mxu0 0.0
          %414 = vmatprep.subr.mxu0 0.0
          %415 = vmatpush2.msra.mxu0 0.0
          %416 = vmatprep.subr.mxu0 0.0
          %417 = vmatpush2.msra.mxu0 0.0
          %418 = vmatprep.subr.mxu0 0.0
          %419 = vmatpush2.msra.mxu0 0.0
          %420 = vmatprep.subr.mxu0 0.0
          %421 = vmatpush2.msra.mxu0 0.0
          %422 = vmatprep.subr.mxu0 0.0
          %423 = vmatpush2.msra.mxu0 0.0
          %424 = vmatprep.subr.mxu0 0.0
          %425 = vmatpush2.msra.mxu0 0.0
          %426 = vmatprep.mubr.f32.mxu0 0.0
          %427 = vmatmul.mubr.f32.gmra.mxu0 %v360
          %v428 = vpop.f32.mrf.mxu0
          %v429 = vadd.f32 %v355, %v428
          %v430 = vpop.f32.mrf.mxu0
          %431 = vdwg.mxu0
          %v432 = vadd.f32 %v429, %v275
          %v433 = vxor.u32 %v432, 2147483648
          %v434 = vmul.f32 %v433, 1.442695
          %v435 = vpow.pop %v434
          %v436 = vadd.f32 %v435, 1.0
          %v437 = vrcp.pop %v436
          %v438 = vmul.f32 1.0, %v437
          %v439 = vtanh.pop %v432
          %v440 = vmul.f32 %v438, 0.0
          %442 = vrot.lane.b32.xlu0 %v439, 96
          %v443 = vpop.permute.xlu0 %442
          %v445 = vmul.f32 %v438, %v443
          %v446 = vadd.f32 %v440, %v445
          %v447 = vtanh.pop %v446
          %449 = vrot.lane.b32.xlu0 %v447, 64
          %v450 = vpop.permute.xlu0 %449
          %v452 = vmul.f32 %v438, %v450
          %454 = vrot.lane.b32.xlu0 %v452, 64
          %v455 = vpop.permute.xlu0 %454
          %458 = vrot.lane.b32.xlu0 %v446, 32
          %v459 = vpop.permute.xlu0 %458
          %462 = vrot.lane.b32.xlu0 %v438, 64
          %v463 = vpop.permute.xlu0 %462
          %465 = vrot.lane.b32.xlu0 %v438, 32
          %v466 = vpop.permute.xlu0 %465
          %v468 = vsel %vm358, %v455, %v459
          %vm469 = vcmask 523264
          %v470 = vsel %vm469, %v468, %v463
          %vm471 = vcmask 785408
          %v472 = vsel %vm471, %v470, %v466
          %s473 = scalar_lea.vmem %s261, 2 [#allocation10]
          %474 = vst [vmem:[%s473] sm:$0x3] %v472
          %s475 = scalar_lea.vmem %s229, 4 [#allocation4]
          %v476 = vld [vmem:[%s475] sm:$0x3]
          %v478 = vsel %vm284, %v476, 0
          %480 = vmatprep.subr.mxu0 0.0
          %481 = vmatpush1.msra.mxu0 0.0
          %482 = vmatprep.subr.mxu0 0.0
          %483 = vmatpush1.msra.mxu0 0.0
          %484 = vmatprep.subr.mxu0 0.0
          %485 = vmatpush1.msra.mxu0 0.0
          %486 = vmatprep.subr.mxu0 0.0
          %487 = vmatpush1.msra.mxu0 0.0
          %488 = vmatprep.subr.mxu0 0.0
          %489 = vmatpush1.msra.mxu0 0.0
          %490 = vmatprep.subr.mxu0 0.0
          %491 = vmatpush1.msra.mxu0 0.0
          %492 = vmatprep.subr.mxu0 0.0
          %493 = vmatpush1.msra.mxu0 0.0
          %494 = vmatprep.subr.mxu0 0.0
          %495 = vmatpush1.msra.mxu0 0.0
          %496 = vmatprep.subr.mxu0 0.0
          %497 = vmatpush1.msra.mxu0 0.0
          %498 = vmatprep.subr.mxu0 0.0
          %499 = vmatpush1.msra.mxu0 0.0
          %500 = vmatprep.subr.mxu0 0.0
          %501 = vmatpush1.msra.mxu0 0.0
          %502 = vmatprep.subr.mxu0 0.0
          %503 = vmatpush1.msra.mxu0 0.0
          %504 = vmatprep.subr.mxu0 0.0
          %505 = vmatpush1.msra.mxu0 0.0
          %506 = vmatprep.subr.mxu0 0.0
          %507 = vmatpush1.msra.mxu0 0.0
          %508 = vmatprep.subr.mxu0 0.0
          %509 = vmatpush1.msra.mxu0 %v265
          %510 = vmatprep.subr.mxu0 0.0
          %511 = vmatpush1.msra.mxu0 %v264
          %512 = vmatprep.subr.mxu0 0.0
          %513 = vmatpush2.msra.mxu0 0.0
          %514 = vmatprep.subr.mxu0 0.0
          %515 = vmatpush2.msra.mxu0 0.0
          %516 = vmatprep.subr.mxu0 0.0
          %517 = vmatpush2.msra.mxu0 0.0
          %518 = vmatprep.subr.mxu0 0.0
          %519 = vmatpush2.msra.mxu0 0.0
          %520 = vmatprep.subr.mxu0 0.0
          %521 = vmatpush2.msra.mxu0 0.0
          %522 = vmatprep.subr.mxu0 0.0
          %523 = vmatpush2.msra.mxu0 0.0
          %524 = vmatprep.subr.mxu0 0.0
          %525 = vmatpush2.msra.mxu0 0.0
          %526 = vmatprep.subr.mxu0 0.0
          %527 = vmatpush2.msra.mxu0 0.0
          %528 = vmatprep.subr.mxu0 0.0
          %529 = vmatpush2.msra.mxu0 0.0
          %530 = vmatprep.subr.mxu0 0.0
          %531 = vmatpush2.msra.mxu0 0.0
          %532 = vmatprep.subr.mxu0 0.0
          %533 = vmatpush2.msra.mxu0 0.0
          %534 = vmatprep.subr.mxu0 0.0
          %535 = vmatpush2.msra.mxu0 0.0
          %536 = vmatprep.subr.mxu0 0.0
          %537 = vmatpush2.msra.mxu0 0.0
          %538 = vmatprep.subr.mxu0 0.0
          %539 = vmatpush2.msra.mxu0 0.0
          %540 = vmatprep.subr.mxu0 0.0
          %541 = vmatpush2.msra.mxu0 0.0
          %542 = vmatprep.subr.mxu0 0.0
          %543 = vmatpush2.msra.mxu0 0.0
          %544 = vmatprep.mubr.f32.mxu0 0.0
          %545 = vmatmul.mubr.f32.gmra.mxu0 %v478
          %v546 = vpop.f32.mrf.mxu0
          %v547 = vadd.f32 0.0, %v546
          %v548 = vpop.f32.mrf.mxu0
          %549 = vdwg.mxu0
          %v550 = vsel %vm358, %v455, 0
          %552 = vmatprep.subr.mxu0 0.0
          %553 = vmatpush1.msra.mxu0 0.0
          %554 = vmatprep.subr.mxu0 0.0
          %555 = vmatpush1.msra.mxu0 0.0
          %556 = vmatprep.subr.mxu0 0.0
          %557 = vmatpush1.msra.mxu0 0.0
          %558 = vmatprep.subr.mxu0 0.0
          %559 = vmatpush1.msra.mxu0 0.0
          %560 = vmatprep.subr.mxu0 0.0
          %561 = vmatpush1.msra.mxu0 0.0
          %562 = vmatprep.subr.mxu0 0.0
          %563 = vmatpush1.msra.mxu0 0.0
          %564 = vmatprep.subr.mxu0 0.0
          %565 = vmatpush1.msra.mxu0 0.0
          %566 = vmatprep.subr.mxu0 0.0
          %567 = vmatpush1.msra.mxu0 0.0
          %568 = vmatprep.subr.mxu0 0.0
          %569 = vmatpush1.msra.mxu0 0.0
          %570 = vmatprep.subr.mxu0 0.0
          %571 = vmatpush1.msra.mxu0 0.0
          %572 = vmatprep.subr.mxu0 0.0
          %573 = vmatpush1.msra.mxu0 0.0
          %574 = vmatprep.subr.mxu0 0.0
          %575 = vmatpush1.msra.mxu0 0.0
          %576 = vmatprep.subr.mxu0 0.0
          %577 = vmatpush1.msra.mxu0 %v269
          %578 = vmatprep.subr.mxu0 0.0
          %579 = vmatpush1.msra.mxu0 %v268
          %580 = vmatprep.subr.mxu0 0.0
          %581 = vmatpush1.msra.mxu0 %v267
          %582 = vmatprep.subr.mxu0 0.0
          %583 = vmatpush1.msra.mxu0 %v266
          %584 = vmatprep.subr.mxu0 0.0
          %585 = vmatpush2.msra.mxu0 0.0
          %586 = vmatprep.subr.mxu0 0.0
          %587 = vmatpush2.msra.mxu0 0.0
          %588 = vmatprep.subr.mxu0 0.0
          %589 = vmatpush2.msra.mxu0 0.0
          %590 = vmatprep.subr.mxu0 0.0
          %591 = vmatpush2.msra.mxu0 0.0
          %592 = vmatprep.subr.mxu0 0.0
          %593 = vmatpush2.msra.mxu0 0.0
          %594 = vmatprep.subr.mxu0 0.0
          %595 = vmatpush2.msra.mxu0 0.0
          %596 = vmatprep.subr.mxu0 0.0
          %597 = vmatpush2.msra.mxu0 0.0
          %598 = vmatprep.subr.mxu0 0.0
          %599 = vmatpush2.msra.mxu0 0.0
          %600 = vmatprep.subr.mxu0 0.0
          %601 = vmatpush2.msra.mxu0 0.0
          %602 = vmatprep.subr.mxu0 0.0
          %603 = vmatpush2.msra.mxu0 0.0
          %604 = vmatprep.subr.mxu0 0.0
          %605 = vmatpush2.msra.mxu0 0.0
          %606 = vmatprep.subr.mxu0 0.0
          %607 = vmatpush2.msra.mxu0 0.0
          %608 = vmatprep.subr.mxu0 0.0
          %609 = vmatpush2.msra.mxu0 0.0
          %610 = vmatprep.subr.mxu0 0.0
          %611 = vmatpush2.msra.mxu0 0.0
          %612 = vmatprep.subr.mxu0 0.0
          %613 = vmatpush2.msra.mxu0 0.0
          %614 = vmatprep.subr.mxu0 0.0
          %615 = vmatpush2.msra.mxu0 0.0
          %616 = vmatprep.mubr.f32.mxu0 0.0
          %617 = vmatmul.mubr.f32.gmra.mxu0 %v550
          %v618 = vpop.f32.mrf.mxu0
          %v619 = vadd.f32 %v547, %v618
          %v620 = vpop.f32.mrf.mxu0
          %621 = vdwg.mxu0
          %v622 = vadd.f32 %v619, %v275
          %v623 = vxor.u32 %v622, 2147483648
          %v624 = vmul.f32 %v623, 1.442695
          %v625 = vpow.pop %v624
          %v626 = vadd.f32 %v625, 1.0
          %v627 = vrcp.pop %v626
          %v628 = vmul.f32 1.0, %v627
          %v629 = vtanh.pop %v622
          %v630 = vmul.f32 %v628, %v446
          %632 = vrot.lane.b32.xlu0 %v629, 96
          %v633 = vpop.permute.xlu0 %632
          %v635 = vmul.f32 %v628, %v633
          %v636 = vadd.f32 %v630, %v635
          %v637 = vtanh.pop %v636
          %639 = vrot.lane.b32.xlu0 %v637, 64
          %v640 = vpop.permute.xlu0 %639
          %v642 = vmul.f32 %v628, %v640
          %644 = vrot.lane.b32.xlu0 %v642, 64
          %v645 = vpop.permute.xlu0 %644
          %648 = vrot.lane.b32.xlu0 %v636, 32
          %v649 = vpop.permute.xlu0 %648
          %652 = vrot.lane.b32.xlu0 %v628, 64
          %v653 = vpop.permute.xlu0 %652
          %655 = vrot.lane.b32.xlu0 %v628, 32
          %v656 = vpop.permute.xlu0 %655
          %v658 = vsel %vm358, %v645, %v649
          %v659 = vsel %vm469, %v658, %v653
          %v660 = vsel %vm471, %v659, %v656
          %s661 = scalar_lea.vmem %s261, 4 [#allocation10]
          %662 = vst [vmem:[%s661] sm:$0x3] %v660
          %vm663 = vcmask 254976
          %664 = vst.msk [vmem:[#allocation2] sm:$0x3] %vm663, %v645
          %665 = vst.msk [vmem:[#allocation3] sm:$0x3] %vm663, %v636
        $region52: #{tpu_custom_call.1} parent=35 // pred_fallthru
          _
        %p666 = scmp.ne.s32.totalorder %s27, 0
        // Predicated region
        $region53: #{tpu_custom_call.1} parent=35 // pred_check
          %p667 = pneg %p666
        $region54: #{tpu_custom_call.1} parent=35 // pred_check_branch
          %669 = sbr.rel (%p667) target = $region56
        $region55: #{tpu_custom_call.1} parent=35 // pred_region
          %v670 = vld [vmem:[#allocation2] sm:$0x3]
          %v671 = vld [vmem:[#allocation3] sm:$0x3]
          %v672 = vld [vmem:[%s229] sm:$0x3]
          %vm673 = vcmask 130048
          %v675 = vsel %vm673, %v672, 0
          %677 = vmatprep.subr.mxu0 0.0
          %678 = vmatpush1.msra.mxu0 0.0
          %679 = vmatprep.subr.mxu0 0.0
          %680 = vmatpush1.msra.mxu0 0.0
          %681 = vmatprep.subr.mxu0 0.0
          %682 = vmatpush1.msra.mxu0 0.0
          %683 = vmatprep.subr.mxu0 0.0
          %684 = vmatpush1.msra.mxu0 0.0
          %685 = vmatprep.subr.mxu0 0.0
          %686 = vmatpush1.msra.mxu0 0.0
          %687 = vmatprep.subr.mxu0 0.0
          %688 = vmatpush1.msra.mxu0 0.0
          %689 = vmatprep.subr.mxu0 0.0
          %690 = vmatpush1.msra.mxu0 0.0
          %691 = vmatprep.subr.mxu0 0.0
          %692 = vmatpush1.msra.mxu0 0.0
          %693 = vmatprep.subr.mxu0 0.0
          %694 = vmatpush1.msra.mxu0 0.0
          %695 = vmatprep.subr.mxu0 0.0
          %696 = vmatpush1.msra.mxu0 0.0
          %697 = vmatprep.subr.mxu0 0.0
          %698 = vmatpush1.msra.mxu0 0.0
          %699 = vmatprep.subr.mxu0 0.0
          %700 = vmatpush1.msra.mxu0 0.0
          %701 = vmatprep.subr.mxu0 0.0
          %702 = vmatpush1.msra.mxu0 0.0
          %703 = vmatprep.subr.mxu0 0.0
          %704 = vmatpush1.msra.mxu0 0.0
          %705 = vmatprep.subr.mxu0 0.0
          %706 = vmatpush1.msra.mxu0 %v265
          %707 = vmatprep.subr.mxu0 0.0
          %708 = vmatpush1.msra.mxu0 %v264
          %709 = vmatprep.subr.mxu0 0.0
          %710 = vmatpush2.msra.mxu0 0.0
          %711 = vmatprep.subr.mxu0 0.0
          %712 = vmatpush2.msra.mxu0 0.0
          %713 = vmatprep.subr.mxu0 0.0
          %714 = vmatpush2.msra.mxu0 0.0
          %715 = vmatprep.subr.mxu0 0.0
          %716 = vmatpush2.msra.mxu0 0.0
          %717 = vmatprep.subr.mxu0 0.0
          %718 = vmatpush2.msra.mxu0 0.0
          %719 = vmatprep.subr.mxu0 0.0
          %720 = vmatpush2.msra.mxu0 0.0
          %721 = vmatprep.subr.mxu0 0.0
          %722 = vmatpush2.msra.mxu0 0.0
          %723 = vmatprep.subr.mxu0 0.0
          %724 = vmatpush2.msra.mxu0 0.0
          %725 = vmatprep.subr.mxu0 0.0
          %726 = vmatpush2.msra.mxu0 0.0
          %727 = vmatprep.subr.mxu0 0.0
          %728 = vmatpush2.msra.mxu0 0.0
          %729 = vmatprep.subr.mxu0 0.0
          %730 = vmatpush2.msra.mxu0 0.0
          %731 = vmatprep.subr.mxu0 0.0
          %732 = vmatpush2.msra.mxu0 0.0
          %733 = vmatprep.subr.mxu0 0.0
          %734 = vmatpush2.msra.mxu0 0.0
          %735 = vmatprep.subr.mxu0 0.0
          %736 = vmatpush2.msra.mxu0 0.0
          %737 = vmatprep.subr.mxu0 0.0
          %738 = vmatpush2.msra.mxu0 0.0
          %739 = vmatprep.subr.mxu0 0.0
          %740 = vmatpush2.msra.mxu0 0.0
          %741 = vmatprep.mubr.f32.mxu0 0.0
          %742 = vmatmul.mubr.f32.gmra.mxu0 %v675
          %v743 = vpop.f32.mrf.mxu0
          %v744 = vadd.f32 0.0, %v743
          %v745 = vpop.f32.mrf.mxu0
          %746 = vdwg.mxu0
          %vm747 = vcmask 261120
          %v749 = vsel %vm747, %v670, 0
          %751 = vmatprep.subr.mxu0 0.0
          %752 = vmatpush1.msra.mxu0 0.0
          %753 = vmatprep.subr.mxu0 0.0
          %754 = vmatpush1.msra.mxu0 0.0
          %755 = vmatprep.subr.mxu0 0.0
          %756 = vmatpush1.msra.mxu0 0.0
          %757 = vmatprep.subr.mxu0 0.0
          %758 = vmatpush1.msra.mxu0 0.0
          %759 = vmatprep.subr.mxu0 0.0
          %760 = vmatpush1.msra.mxu0 0.0
          %761 = vmatprep.subr.mxu0 0.0
          %762 = vmatpush1.msra.mxu0 0.0
          %763 = vmatprep.subr.mxu0 0.0
          %764 = vmatpush1.msra.mxu0 0.0
          %765 = vmatprep.subr.mxu0 0.0
          %766 = vmatpush1.msra.mxu0 0.0
          %767 = vmatprep.subr.mxu0 0.0
          %768 = vmatpush1.msra.mxu0 0.0
          %769 = vmatprep.subr.mxu0 0.0
          %770 = vmatpush1.msra.mxu0 0.0
          %771 = vmatprep.subr.mxu0 0.0
          %772 = vmatpush1.msra.mxu0 0.0
          %773 = vmatprep.subr.mxu0 0.0
          %774 = vmatpush1.msra.mxu0 0.0
          %775 = vmatprep.subr.mxu0 0.0
          %776 = vmatpush1.msra.mxu0 %v269
          %777 = vmatprep.subr.mxu0 0.0
          %778 = vmatpush1.msra.mxu0 %v268
          %779 = vmatprep.subr.mxu0 0.0
          %780 = vmatpush1.msra.mxu0 %v267
          %781 = vmatprep.subr.mxu0 0.0
          %782 = vmatpush1.msra.mxu0 %v266
          %783 = vmatprep.subr.mxu0 0.0
          %784 = vmatpush2.msra.mxu0 0.0
          %785 = vmatprep.subr.mxu0 0.0
          %786 = vmatpush2.msra.mxu0 0.0
          %787 = vmatprep.subr.mxu0 0.0
          %788 = vmatpush2.msra.mxu0 0.0
          %789 = vmatprep.subr.mxu0 0.0
          %790 = vmatpush2.msra.mxu0 0.0
          %791 = vmatprep.subr.mxu0 0.0
          %792 = vmatpush2.msra.mxu0 0.0
          %793 = vmatprep.subr.mxu0 0.0
          %794 = vmatpush2.msra.mxu0 0.0
          %795 = vmatprep.subr.mxu0 0.0
          %796 = vmatpush2.msra.mxu0 0.0
          %797 = vmatprep.subr.mxu0 0.0
          %798 = vmatpush2.msra.mxu0 0.0
          %799 = vmatprep.subr.mxu0 0.0
          %800 = vmatpush2.msra.mxu0 0.0
          %801 = vmatprep.subr.mxu0 0.0
          %802 = vmatpush2.msra.mxu0 0.0
          %803 = vmatprep.subr.mxu0 0.0
          %804 = vmatpush2.msra.mxu0 0.0
          %805 = vmatprep.subr.mxu0 0.0
          %806 = vmatpush2.msra.mxu0 0.0
          %807 = vmatprep.subr.mxu0 0.0
          %808 = vmatpush2.msra.mxu0 0.0
          %809 = vmatprep.subr.mxu0 0.0
          %810 = vmatpush2.msra.mxu0 0.0
          %811 = vmatprep.subr.mxu0 0.0
          %812 = vmatpush2.msra.mxu0 0.0
          %813 = vmatprep.subr.mxu0 0.0
          %814 = vmatpush2.msra.mxu0 0.0
          %815 = vmatprep.mubr.f32.mxu0 0.0
          %816 = vmatmul.mubr.f32.gmra.mxu0 %v749
          %v817 = vpop.f32.mrf.mxu0
          %v818 = vadd.f32 %v744, %v817
          %v819 = vpop.f32.mrf.mxu0
          %820 = vdwg.mxu0
          %v821 = vadd.f32 %v818, %v275
          %v822 = vxor.u32 %v821, 2147483648
          %v823 = vmul.f32 %v822, 1.442695
          %v824 = vpow.pop %v823
          %v825 = vadd.f32 %v824, 1.0
          %v826 = vrcp.pop %v825
          %v827 = vmul.f32 1.0, %v826
          %v828 = vtanh.pop %v821
          %v829 = vmul.f32 %v827, %v671
          %831 = vrot.lane.b32.xlu0 %v828, 96
          %v832 = vpop.permute.xlu0 %831
          %v834 = vmul.f32 %v827, %v832
          %v835 = vadd.f32 %v829, %v834
          %v836 = vtanh.pop %v835
          %838 = vrot.lane.b32.xlu0 %v836, 64
          %v839 = vpop.permute.xlu0 %838
          %v841 = vmul.f32 %v827, %v839
          %843 = vrot.lane.b32.xlu0 %v841, 64
          %v844 = vpop.permute.xlu0 %843
          %847 = vrot.lane.b32.xlu0 %v835, 32
          %v848 = vpop.permute.xlu0 %847
          %851 = vrot.lane.b32.xlu0 %v827, 64
          %v852 = vpop.permute.xlu0 %851
          %854 = vrot.lane.b32.xlu0 %v827, 32
          %v855 = vpop.permute.xlu0 %854
          %v857 = vsel %vm747, %v844, %v848
          %vm858 = vcmask 523264
          %v859 = vsel %vm858, %v857, %v852
          %vm860 = vcmask 785408
          %v861 = vsel %vm860, %v859, %v855
          %862 = vst [vmem:[%s261] sm:$0x3] %v861
          %s863 = scalar_lea.vmem %s229, 2 [#allocation4]
          %v864 = vld [vmem:[%s863] sm:$0x3]
          %v866 = vsel %vm673, %v864, 0
          %868 = vmatprep.subr.mxu0 0.0
          %869 = vmatpush1.msra.mxu0 0.0
          %870 = vmatprep.subr.mxu0 0.0
          %871 = vmatpush1.msra.mxu0 0.0
          %872 = vmatprep.subr.mxu0 0.0
          %873 = vmatpush1.msra.mxu0 0.0
          %874 = vmatprep.subr.mxu0 0.0
          %875 = vmatpush1.msra.mxu0 0.0
          %876 = vmatprep.subr.mxu0 0.0
          %877 = vmatpush1.msra.mxu0 0.0
          %878 = vmatprep.subr.mxu0 0.0
          %879 = vmatpush1.msra.mxu0 0.0
          %880 = vmatprep.subr.mxu0 0.0
          %881 = vmatpush1.msra.mxu0 0.0
          %882 = vmatprep.subr.mxu0 0.0
          %883 = vmatpush1.msra.mxu0 0.0
          %884 = vmatprep.subr.mxu0 0.0
          %885 = vmatpush1.msra.mxu0 0.0
          %886 = vmatprep.subr.mxu0 0.0
          %887 = vmatpush1.msra.mxu0 0.0
          %888 = vmatprep.subr.mxu0 0.0
          %889 = vmatpush1.msra.mxu0 0.0
          %890 = vmatprep.subr.mxu0 0.0
          %891 = vmatpush1.msra.mxu0 0.0
          %892 = vmatprep.subr.mxu0 0.0
          %893 = vmatpush1.msra.mxu0 0.0
          %894 = vmatprep.subr.mxu0 0.0
          %895 = vmatpush1.msra.mxu0 0.0
          %896 = vmatprep.subr.mxu0 0.0
          %897 = vmatpush1.msra.mxu0 %v265
          %898 = vmatprep.subr.mxu0 0.0
          %899 = vmatpush1.msra.mxu0 %v264
          %900 = vmatprep.subr.mxu0 0.0
          %901 = vmatpush2.msra.mxu0 0.0
          %902 = vmatprep.subr.mxu0 0.0
          %903 = vmatpush2.msra.mxu0 0.0
          %904 = vmatprep.subr.mxu0 0.0
          %905 = vmatpush2.msra.mxu0 0.0
          %906 = vmatprep.subr.mxu0 0.0
          %907 = vmatpush2.msra.mxu0 0.0
          %908 = vmatprep.subr.mxu0 0.0
          %909 = vmatpush2.msra.mxu0 0.0
          %910 = vmatprep.subr.mxu0 0.0
          %911 = vmatpush2.msra.mxu0 0.0
          %912 = vmatprep.subr.mxu0 0.0
          %913 = vmatpush2.msra.mxu0 0.0
          %914 = vmatprep.subr.mxu0 0.0
          %915 = vmatpush2.msra.mxu0 0.0
          %916 = vmatprep.subr.mxu0 0.0
          %917 = vmatpush2.msra.mxu0 0.0
          %918 = vmatprep.subr.mxu0 0.0
          %919 = vmatpush2.msra.mxu0 0.0
          %920 = vmatprep.subr.mxu0 0.0
          %921 = vmatpush2.msra.mxu0 0.0
          %922 = vmatprep.subr.mxu0 0.0
          %923 = vmatpush2.msra.mxu0 0.0
          %924 = vmatprep.subr.mxu0 0.0
          %925 = vmatpush2.msra.mxu0 0.0
          %926 = vmatprep.subr.mxu0 0.0
          %927 = vmatpush2.msra.mxu0 0.0
          %928 = vmatprep.subr.mxu0 0.0
          %929 = vmatpush2.msra.mxu0 0.0
          %930 = vmatprep.subr.mxu0 0.0
          %931 = vmatpush2.msra.mxu0 0.0
          %932 = vmatprep.mubr.f32.mxu0 0.0
          %933 = vmatmul.mubr.f32.gmra.mxu0 %v866
          %v934 = vpop.f32.mrf.mxu0
          %v935 = vadd.f32 0.0, %v934
          %v936 = vpop.f32.mrf.mxu0
          %937 = vdwg.mxu0
          %v938 = vsel %vm747, %v844, 0
          %940 = vmatprep.subr.mxu0 0.0
          %941 = vmatpush1.msra.mxu0 0.0
          %942 = vmatprep.subr.mxu0 0.0
          %943 = vmatpush1.msra.mxu0 0.0
          %944 = vmatprep.subr.mxu0 0.0
          %945 = vmatpush1.msra.mxu0 0.0
          %946 = vmatprep.subr.mxu0 0.0
          %947 = vmatpush1.msra.mxu0 0.0
          %948 = vmatprep.subr.mxu0 0.0
          %949 = vmatpush1.msra.mxu0 0.0
          %950 = vmatprep.subr.mxu0 0.0
          %951 = vmatpush1.msra.mxu0 0.0
          %952 = vmatprep.subr.mxu0 0.0
          %953 = vmatpush1.msra.mxu0 0.0
          %954 = vmatprep.subr.mxu0 0.0
          %955 = vmatpush1.msra.mxu0 0.0
          %956 = vmatprep.subr.mxu0 0.0
          %957 = vmatpush1.msra.mxu0 0.0
          %958 = vmatprep.subr.mxu0 0.0
          %959 = vmatpush1.msra.mxu0 0.0
          %960 = vmatprep.subr.mxu0 0.0
          %961 = vmatpush1.msra.mxu0 0.0
          %962 = vmatprep.subr.mxu0 0.0
          %963 = vmatpush1.msra.mxu0 0.0
          %964 = vmatprep.subr.mxu0 0.0
          %965 = vmatpush1.msra.mxu0 %v269
          %966 = vmatprep.subr.mxu0 0.0
          %967 = vmatpush1.msra.mxu0 %v268
          %968 = vmatprep.subr.mxu0 0.0
          %969 = vmatpush1.msra.mxu0 %v267
          %970 = vmatprep.subr.mxu0 0.0
          %971 = vmatpush1.msra.mxu0 %v266
          %972 = vmatprep.subr.mxu0 0.0
          %973 = vmatpush2.msra.mxu0 0.0
          %974 = vmatprep.subr.mxu0 0.0
          %975 = vmatpush2.msra.mxu0 0.0
          %976 = vmatprep.subr.mxu0 0.0
          %977 = vmatpush2.msra.mxu0 0.0
          %978 = vmatprep.subr.mxu0 0.0
          %979 = vmatpush2.msra.mxu0 0.0
          %980 = vmatprep.subr.mxu0 0.0
          %981 = vmatpush2.msra.mxu0 0.0
          %982 = vmatprep.subr.mxu0 0.0
          %983 = vmatpush2.msra.mxu0 0.0
          %984 = vmatprep.subr.mxu0 0.0
          %985 = vmatpush2.msra.mxu0 0.0
          %986 = vmatprep.subr.mxu0 0.0
          %987 = vmatpush2.msra.mxu0 0.0
          %988 = vmatprep.subr.mxu0 0.0
          %989 = vmatpush2.msra.mxu0 0.0
          %990 = vmatprep.subr.mxu0 0.0
          %991 = vmatpush2.msra.mxu0 0.0
          %992 = vmatprep.subr.mxu0 0.0
          %993 = vmatpush2.msra.mxu0 0.0
          %994 = vmatprep.subr.mxu0 0.0
          %995 = vmatpush2.msra.mxu0 0.0
          %996 = vmatprep.subr.mxu0 0.0
          %997 = vmatpush2.msra.mxu0 0.0
          %998 = vmatprep.subr.mxu0 0.0
          %999 = vmatpush2.msra.mxu0 0.0
          %1000 = vmatprep.subr.mxu0 0.0
          %1001 = vmatpush2.msra.mxu0 0.0
          %1002 = vmatprep.subr.mxu0 0.0
          %1003 = vmatpush2.msra.mxu0 0.0
          %1004 = vmatprep.mubr.f32.mxu0 0.0
          %1005 = vmatmul.mubr.f32.gmra.mxu0 %v938
          %v1006 = vpop.f32.mrf.mxu0
          %v1007 = vadd.f32 %v935, %v1006
          %v1008 = vpop.f32.mrf.mxu0
          %1009 = vdwg.mxu0
          %v1010 = vadd.f32 %v1007, %v275
          %v1011 = vxor.u32 %v1010, 2147483648
          %v1012 = vmul.f32 %v1011, 1.442695
          %v1013 = vpow.pop %v1012
          %v1014 = vadd.f32 %v1013, 1.0
          %v1015 = vrcp.pop %v1014
          %v1016 = vmul.f32 1.0, %v1015
          %v1017 = vtanh.pop %v1010
          %v1018 = vmul.f32 %v1016, %v835
          %1020 = vrot.lane.b32.xlu0 %v1017, 96
          %v1021 = vpop.permute.xlu0 %1020
          %v1023 = vmul.f32 %v1016, %v1021
          %v1024 = vadd.f32 %v1018, %v1023
          %v1025 = vtanh.pop %v1024
          %1027 = vrot.lane.b32.xlu0 %v1025, 64
          %v1028 = vpop.permute.xlu0 %1027
          %v1030 = vmul.f32 %v1016, %v1028
          %1032 = vrot.lane.b32.xlu0 %v1030, 64
          %v1033 = vpop.permute.xlu0 %1032
          %1036 = vrot.lane.b32.xlu0 %v1024, 32
          %v1037 = vpop.permute.xlu0 %1036
          %1040 = vrot.lane.b32.xlu0 %v1016, 64
          %v1041 = vpop.permute.xlu0 %1040
          %1043 = vrot.lane.b32.xlu0 %v1016, 32
          %v1044 = vpop.permute.xlu0 %1043
          %v1046 = vsel %vm747, %v1033, %v1037
          %v1047 = vsel %vm858, %v1046, %v1041
          %v1048 = vsel %vm860, %v1047, %v1044
          %s1049 = scalar_lea.vmem %s261, 2 [#allocation10]
          %1050 = vst [vmem:[%s1049] sm:$0x3] %v1048
          %s1051 = scalar_lea.vmem %s229, 4 [#allocation4]
          %v1052 = vld [vmem:[%s1051] sm:$0x3]
          %v1054 = vsel %vm673, %v1052, 0
          %1056 = vmatprep.subr.mxu0 0.0
          %1057 = vmatpush1.msra.mxu0 0.0
          %1058 = vmatprep.subr.mxu0 0.0
          %1059 = vmatpush1.msra.mxu0 0.0
          %1060 = vmatprep.subr.mxu0 0.0
          %1061 = vmatpush1.msra.mxu0 0.0
          %1062 = vmatprep.subr.mxu0 0.0
          %1063 = vmatpush1.msra.mxu0 0.0
          %1064 = vmatprep.subr.mxu0 0.0
          %1065 = vmatpush1.msra.mxu0 0.0
          %1066 = vmatprep.subr.mxu0 0.0
          %1067 = vmatpush1.msra.mxu0 0.0
          %1068 = vmatprep.subr.mxu0 0.0
          %1069 = vmatpush1.msra.mxu0 0.0
          %1070 = vmatprep.subr.mxu0 0.0
          %1071 = vmatpush1.msra.mxu0 0.0
          %1072 = vmatprep.subr.mxu0 0.0
          %1073 = vmatpush1.msra.mxu0 0.0
          %1074 = vmatprep.subr.mxu0 0.0
          %1075 = vmatpush1.msra.mxu0 0.0
          %1076 = vmatprep.subr.mxu0 0.0
          %1077 = vmatpush1.msra.mxu0 0.0
          %1078 = vmatprep.subr.mxu0 0.0
          %1079 = vmatpush1.msra.mxu0 0.0
          %1080 = vmatprep.subr.mxu0 0.0
          %1081 = vmatpush1.msra.mxu0 0.0
          %1082 = vmatprep.subr.mxu0 0.0
          %1083 = vmatpush1.msra.mxu0 0.0
          %1084 = vmatprep.subr.mxu0 0.0
          %1085 = vmatpush1.msra.mxu0 %v265
          %1086 = vmatprep.subr.mxu0 0.0
          %1087 = vmatpush1.msra.mxu0 %v264
          %1088 = vmatprep.subr.mxu0 0.0
          %1089 = vmatpush2.msra.mxu0 0.0
          %1090 = vmatprep.subr.mxu0 0.0
          %1091 = vmatpush2.msra.mxu0 0.0
          %1092 = vmatprep.subr.mxu0 0.0
          %1093 = vmatpush2.msra.mxu0 0.0
          %1094 = vmatprep.subr.mxu0 0.0
          %1095 = vmatpush2.msra.mxu0 0.0
          %1096 = vmatprep.subr.mxu0 0.0
          %1097 = vmatpush2.msra.mxu0 0.0
          %1098 = vmatprep.subr.mxu0 0.0
          %1099 = vmatpush2.msra.mxu0 0.0
          %1100 = vmatprep.subr.mxu0 0.0
          %1101 = vmatpush2.msra.mxu0 0.0
          %1102 = vmatprep.subr.mxu0 0.0
          %1103 = vmatpush2.msra.mxu0 0.0
          %1104 = vmatprep.subr.mxu0 0.0
          %1105 = vmatpush2.msra.mxu0 0.0
          %1106 = vmatprep.subr.mxu0 0.0
          %1107 = vmatpush2.msra.mxu0 0.0
          %1108 = vmatprep.subr.mxu0 0.0
          %1109 = vmatpush2.msra.mxu0 0.0
          %1110 = vmatprep.subr.mxu0 0.0
          %1111 = vmatpush2.msra.mxu0 0.0
          %1112 = vmatprep.subr.mxu0 0.0
          %1113 = vmatpush2.msra.mxu0 0.0
          %1114 = vmatprep.subr.mxu0 0.0
          %1115 = vmatpush2.msra.mxu0 0.0
          %1116 = vmatprep.subr.mxu0 0.0
          %1117 = vmatpush2.msra.mxu0 0.0
          %1118 = vmatprep.subr.mxu0 0.0
          %1119 = vmatpush2.msra.mxu0 0.0
          %1120 = vmatprep.mubr.f32.mxu0 0.0
          %1121 = vmatmul.mubr.f32.gmra.mxu0 %v1054
          %v1122 = vpop.f32.mrf.mxu0
          %v1123 = vadd.f32 0.0, %v1122
          %v1124 = vpop.f32.mrf.mxu0
          %1125 = vdwg.mxu0
          %v1126 = vsel %vm747, %v1033, 0
          %1128 = vmatprep.subr.mxu0 0.0
          %1129 = vmatpush1.msra.mxu0 0.0
          %1130 = vmatprep.subr.mxu0 0.0
          %1131 = vmatpush1.msra.mxu0 0.0
          %1132 = vmatprep.subr.mxu0 0.0
          %1133 = vmatpush1.msra.mxu0 0.0
          %1134 = vmatprep.subr.mxu0 0.0
          %1135 = vmatpush1.msra.mxu0 0.0
          %1136 = vmatprep.subr.mxu0 0.0
          %1137 = vmatpush1.msra.mxu0 0.0
          %1138 = vmatprep.subr.mxu0 0.0
          %1139 = vmatpush1.msra.mxu0 0.0
          %1140 = vmatprep.subr.mxu0 0.0
          %1141 = vmatpush1.msra.mxu0 0.0
          %1142 = vmatprep.subr.mxu0 0.0
          %1143 = vmatpush1.msra.mxu0 0.0
          %1144 = vmatprep.subr.mxu0 0.0
          %1145 = vmatpush1.msra.mxu0 0.0
          %1146 = vmatprep.subr.mxu0 0.0
          %1147 = vmatpush1.msra.mxu0 0.0
          %1148 = vmatprep.subr.mxu0 0.0
          %1149 = vmatpush1.msra.mxu0 0.0
          %1150 = vmatprep.subr.mxu0 0.0
          %1151 = vmatpush1.msra.mxu0 0.0
          %1152 = vmatprep.subr.mxu0 0.0
          %1153 = vmatpush1.msra.mxu0 %v269
          %1154 = vmatprep.subr.mxu0 0.0
          %1155 = vmatpush1.msra.mxu0 %v268
          %1156 = vmatprep.subr.mxu0 0.0
          %1157 = vmatpush1.msra.mxu0 %v267
          %1158 = vmatprep.subr.mxu0 0.0
          %1159 = vmatpush1.msra.mxu0 %v266
          %1160 = vmatprep.subr.mxu0 0.0
          %1161 = vmatpush2.msra.mxu0 0.0
          %1162 = vmatprep.subr.mxu0 0.0
          %1163 = vmatpush2.msra.mxu0 0.0
          %1164 = vmatprep.subr.mxu0 0.0
          %1165 = vmatpush2.msra.mxu0 0.0
          %1166 = vmatprep.subr.mxu0 0.0
          %1167 = vmatpush2.msra.mxu0 0.0
          %1168 = vmatprep.subr.mxu0 0.0
          %1169 = vmatpush2.msra.mxu0 0.0
          %1170 = vmatprep.subr.mxu0 0.0
          %1171 = vmatpush2.msra.mxu0 0.0
          %1172 = vmatprep.subr.mxu0 0.0
          %1173 = vmatpush2.msra.mxu0 0.0
          %1174 = vmatprep.subr.mxu0 0.0
          %1175 = vmatpush2.msra.mxu0 0.0
          %1176 = vmatprep.subr.mxu0 0.0
          %1177 = vmatpush2.msra.mxu0 0.0
          %1178 = vmatprep.subr.mxu0 0.0
          %1179 = vmatpush2.msra.mxu0 0.0
          %1180 = vmatprep.subr.mxu0 0.0
          %1181 = vmatpush2.msra.mxu0 0.0
          %1182 = vmatprep.subr.mxu0 0.0
          %1183 = vmatpush2.msra.mxu0 0.0
          %1184 = vmatprep.subr.mxu0 0.0
          %1185 = vmatpush2.msra.mxu0 0.0
          %1186 = vmatprep.subr.mxu0 0.0
          %1187 = vmatpush2.msra.mxu0 0.0
          %1188 = vmatprep.subr.mxu0 0.0
          %1189 = vmatpush2.msra.mxu0 0.0
          %1190 = vmatprep.subr.mxu0 0.0
          %1191 = vmatpush2.msra.mxu0 0.0
          %1192 = vmatprep.mubr.f32.mxu0 0.0
          %1193 = vmatmul.mubr.f32.gmra.mxu0 %v1126
          %v1194 = vpop.f32.mrf.mxu0
          %v1195 = vadd.f32 %v1123, %v1194
          %v1196 = vpop.f32.mrf.mxu0
          %1197 = vdwg.mxu0
          %v1198 = vadd.f32 %v1195, %v275
          %v1199 = vxor.u32 %v1198, 2147483648
          %v1200 = vmul.f32 %v1199, 1.442695
          %v1201 = vpow.pop %v1200
          %v1202 = vadd.f32 %v1201, 1.0
          %v1203 = vrcp.pop %v1202
          %v1204 = vmul.f32 1.0, %v1203
          %v1205 = vtanh.pop %v1198
          %v1206 = vmul.f32 %v1204, %v1024
          %1208 = vrot.lane.b32.xlu0 %v1205, 96
          %v1209 = vpop.permute.xlu0 %1208
          %v1211 = vmul.f32 %v1204, %v1209
          %v1212 = vadd.f32 %v1206, %v1211
          %v1213 = vtanh.pop %v1212
          %1215 = vrot.lane.b32.xlu0 %v1213, 64
          %v1216 = vpop.permute.xlu0 %1215
          %v1218 = vmul.f32 %v1204, %v1216
          %1220 = vrot.lane.b32.xlu0 %v1218, 64
          %v1221 = vpop.permute.xlu0 %1220
          %1224 = vrot.lane.b32.xlu0 %v1212, 32
          %v1225 = vpop.permute.xlu0 %1224
          %1228 = vrot.lane.b32.xlu0 %v1204, 64
          %v1229 = vpop.permute.xlu0 %1228
          %1231 = vrot.lane.b32.xlu0 %v1204, 32
          %v1232 = vpop.permute.xlu0 %1231
          %v1234 = vsel %vm747, %v1221, %v1225
          %v1235 = vsel %vm858, %v1234, %v1229
          %v1236 = vsel %vm860, %v1235, %v1232
          %s1237 = scalar_lea.vmem %s261, 4 [#allocation10]
          %1238 = vst [vmem:[%s1237] sm:$0x3] %v1236
          %vm1239 = vcmask 254976
          %1240 = vst.msk [vmem:[#allocation2] sm:$0x3] %vm1239, %v1221
          %1241 = vst.msk [vmem:[#allocation3] sm:$0x3] %vm1239, %v1212
        $region56: #{tpu_custom_call.1} parent=35 // pred_fallthru
          _
        %s1242 = sand.u32 %s135, 1
        %s1243 = scalar_lea.sflag [#allocation6], %s1242
        %s1244 = sand.u32 %s135, 1
        %s1245 = smul.addr %s1244, 6
        %s1246 = scalar_lea.vmem [#allocation10], %s1245
        // Predicated region
        $region57: #{tpu_custom_call.1} parent=35 // pred_check
          %p1247 = pneg %p145
        $region58: #{tpu_custom_call.1} parent=35 // pred_check_branch
          %1249 = sbr.rel (%p1247) target = $region60
        $region59: #{tpu_custom_call.1} parent=35 // pred_region
          %s1250 = smul.u32 3, %s27
          %s1252 = ssub.s32 96, 96
          %1253 = vsyncadd %s1243, %s1252
          %s1254 = sadd.s32 %s26, %s1250
          %s1255 = smul.addr %s1254, 32
          %s1256 = scalar_lea.hbm %s4, %s1255
          %s1257 = sshll.u32 %s1246, 4
          %s1258 = int_to_ptr.vmem [resolvable:$true] %s1257
          %1263 = dma.vmem_to_hbm [thread:$0]  %s1258, 96, %s1256, %s1243, 32, 32, 2
        $region60: #{tpu_custom_call.1} parent=35 // pred_fallthru
          _
      $region36: #{tpu_custom_call.1} parent=5 // pred_fallthru
        _
      %p1264 = scmp.le.s32.totalorder 2, %s17
      // Predicated region
      $region61: #{tpu_custom_call.1} parent=5 // pred_check
        %p1265 = pneg %p1264
      $region62: #{tpu_custom_call.1} parent=5 // pred_check_branch
        %1267 = sbr.rel (%p1265) target = $region64
      $region63: #{tpu_custom_call.1} parent=5 // pred_region
        %s1268 = ssub.s32 %s17, 2
        // Predicated region
        $region65: #{tpu_custom_call.1} parent=63 // pred_check
          %p1269 = pneg %p151
        $region66: #{tpu_custom_call.1} parent=63 // pred_check_branch
          %1271 = sbr.rel (%p1269) target = $region68
        $region67: #{tpu_custom_call.1} parent=63 // pred_region
          %s1272 = sand.u32 %s136, 1
          %s1273 = scalar_lea.sflag [#allocation6], %s1272
          %s1274 = sand.u32 %s136, 1
          %s1275 = smul.addr %s1274, 6
          %s1276 = scalar_lea.vmem [#allocation10], %s1275
          %1277 = dma.done %s1273, 96
        $region68: #{tpu_custom_call.1} parent=63 // pred_fallthru
          _
      $region64: #{tpu_custom_call.1} parent=5 // pred_fallthru
        _
    $region6: #{tpu_custom_call.1} parent=1 // loop_footer
      %s21 = sadd.s32 1, %s17
    $region7: #{tpu_custom_call.1} parent=1 // loop_footer_branch
      %16 = sbr.rel target = $region3
    $region8: #{tpu_custom_call.1} parent=1 // loop_exit
      _
    %1278 = vsyncpa [#allocation5], 1
    %s1279 = scalar_lea.sflag [#allocation5], 1
    %1280 = vsyncpa %s1279, 1
    %1281 = vsyncpa [#allocation8], 1
    %1282 = vsyncpa [#allocation6], 1
    %s1283 = scalar_lea.sflag [#allocation6], 1
    %1284 = vsyncpa %s1283, 1

</llo_original>
